<compile_context>
chip_gen: v5e
topology: v5e:2x2
jax: 0.10.0
libtpu: 0.0.40
codegen_flags: <defaults>
</compile_context>

<pallas_src>
import functools
import math

import jax
import jax.numpy as jnp
from jax.experimental import pallas as pl
from jax.experimental.pallas import tpu as pltpu


def _layer_norm(x, gamma, beta, eps=1e-5):
    # x: (S, H) f32, gamma/beta: (1, H) f32; biased variance like torch.nn.LayerNorm
    mean = jnp.mean(x, axis=-1, keepdims=True)
    var = jnp.mean((x - mean) ** 2, axis=-1, keepdims=True)
    return (x - mean) * jax.lax.rsqrt(var + eps) * gamma + beta


def transformer_layer_kernel(
    x_ref, bias_ref,
    wq_ref, wk_ref, wv_ref, wo_ref,
    ln1_g_ref, ln1_b_ref, ln2_g_ref, ln2_b_ref,
    w1_ref, b1_ref, w2_ref, b2_ref,
    o_ref,
    *, num_heads, head_dim,
):
    x = x_ref[0]                                   # (S, H) f32 (kept f32 for residuals)
    x_bf = x.astype(jnp.bfloat16)
    bias = bias_ref[0, 0].astype(jnp.float32)      # (S, S) additive mask bias
    scale = head_dim ** (-0.5)

    # --- QKV projections: bf16 operands on the MXU, f32 accumulation ---------
    q = jnp.dot(x_bf, wq_ref[...], preferred_element_type=jnp.float32) * scale  # scale folded here
    k = jnp.dot(x_bf, wk_ref[...], preferred_element_type=jnp.float32)
    v = jnp.dot(x_bf, wv_ref[...], preferred_element_type=jnp.float32)

    def split_heads(t):                            # (S, H) f32 -> (nh, S, hd) bf16
        t = t.astype(jnp.bfloat16)
        return jnp.stack(
            [t[:, h * head_dim:(h + 1) * head_dim] for h in range(num_heads)],
            axis=0,
        )

    qh = split_heads(q)
    kh = split_heads(k)
    vh = split_heads(v)

    # --- All heads in one batched matmul (scores), additive mask bias --------
    scores = jnp.einsum(
        "hqd,hkd->hqk", qh, kh, preferred_element_type=jnp.float32)  # (nh, S, S)
    scores = scores + bias[None, :, :]

    # Numerically-stable softmax in f32; divide goes to the EUP reciprocal.
    m = jnp.max(scores, axis=-1, keepdims=True)
    p = jnp.exp(scores - m)
    denom = jnp.sum(p, axis=-1, keepdims=True)
    p = p * pl.reciprocal(denom, approx=True)

    # --- P @ V for all heads in one batched matmul ----------------------------
    ctx = jnp.einsum(
        "hqk,hkd->hqd", p.astype(jnp.bfloat16), vh,
        preferred_element_type=jnp.float32)        # (nh, S, hd)

    attn = jnp.concatenate([ctx[h] for h in range(num_heads)], axis=-1)  # (S, H)
    attn_out = jnp.dot(
        attn.astype(jnp.bfloat16), wo_ref[...], preferred_element_type=jnp.float32)

    # --- Residual + LayerNorm 1 ------------------------------------------------
    x1 = x + _layer_norm(attn_out, ln1_g_ref[...], ln1_b_ref[...])

    # --- MLP (dropout is identity: eval-mode semantics) ------------------------
    h1 = jnp.dot(
        x1.astype(jnp.bfloat16), w1_ref[...],
        preferred_element_type=jnp.float32) + b1_ref[...]
    h1 = jnp.maximum(h1, 0.0)
    mlp_out = jnp.dot(
        h1.astype(jnp.bfloat16), w2_ref[...],
        preferred_element_type=jnp.float32) + b2_ref[...]

    # --- Residual + LayerNorm 2 ------------------------------------------------
    x2 = x1 + _layer_norm(mlp_out, ln2_g_ref[...], ln2_b_ref[...])

    o_ref[0] = x2.astype(o_ref.dtype)


def transformer_layer(x, mask, params, num_heads):
    B, S, H = x.shape
    M = params["w1"].shape[1]
    head_dim = H // num_heads
    bf16 = jnp.bfloat16

    # bf16 weights for the MXU (halves weight DMA + VMEM); biases/LN params stay f32.
    wq = params["wq"].astype(bf16)
    wk = params["wk"].astype(bf16)
    wv = params["wv"].astype(bf16)
    wo = params["wo"].astype(bf16)
    w1 = params["w1"].astype(bf16)
    w2 = params["w2"].astype(bf16)

    # Additive mask bias (0 where attended, -1e30 where masked), bf16 to cut DMA.
    mask_bias = jnp.where(mask > 0, 0.0, -1e30).astype(bf16)

    def rep(shape):
        # full-array (non-batched) operand, replicated across the grid
        return pl.BlockSpec(shape, lambda b: (0,) * len(shape))

    kernel = functools.partial(
        transformer_layer_kernel, num_heads=num_heads, head_dim=head_dim
    )

    # Advisory cost estimate for XLA's scheduler.
    flops = B * (8 * S * H * H + 4 * S * S * H + 4 * S * H * M)
    transcendentals = B * (num_heads * S * S + num_heads * S + 4 * S)
    bytes_accessed = (
        2 * B * S * H * 4                       # x in + out (f32)
        + B * S * S * 2                         # mask bias (bf16)
        + 2 * (4 * H * H + 2 * H * M)           # bf16 weights
        + 4 * (5 * H + M)                       # f32 biases + LN params
    )

    # VMEM budget: double-buffered weights/blocks + live f32 intermediates, with headroom.
    est = (
        2 * 2 * (4 * H * H + 2 * H * M)                          # bf16 weights
        + 2 * 2 * (S * H * 4 + S * S * 2 + S * H * 4)            # x, bias, out blocks
        + 4 * (8 * S * H + 3 * num_heads * S * S + 2 * S * M)    # intermediates
    )
    vmem_limit = int(min(max(2 * est, 32 * 1024 * 1024), 56 * 1024 * 1024))

    return pl.pallas_call(
        kernel,
        out_shape=jax.ShapeDtypeStruct((B, S, H), x.dtype),
        grid_spec=pltpu.PrefetchScalarGridSpec(
            num_scalar_prefetch=0,
            grid=(B,),
            in_specs=[
                pl.BlockSpec((1, S, H), lambda b: (b, 0, 0)),        # x
                pl.BlockSpec((1, 1, S, S), lambda b: (b, 0, 0, 0)),  # mask bias
                rep((H, H)), rep((H, H)), rep((H, H)), rep((H, H)),  # Wq Wk Wv Wo
                rep((1, H)), rep((1, H)), rep((1, H)), rep((1, H)),  # ln1 g/b, ln2 g/b
                rep((H, M)), rep((1, M)), rep((M, H)), rep((1, H)),  # W1 b1 W2 b2
            ],
            out_specs=pl.BlockSpec((1, S, H), lambda b: (b, 0, 0)),
        ),
        compiler_params=pltpu.CompilerParams(
            dimension_semantics=("parallel",),
            vmem_limit_bytes=vmem_limit,
        ),
        cost_estimate=pl.CostEstimate(
            flops=flops,
            transcendentals=transcendentals,
            bytes_accessed=bytes_accessed,
        ),
    )(
        x, mask_bias,
        wq, wk, wv, wo,
        params["ln1_g"], params["ln1_b"], params["ln2_g"], params["ln2_b"],
        w1, params["b1"], w2, params["b2"],
    )


def reference_forward(x, mask, params, num_heads):
    """Pure-JAX f32 reference mirroring the PyTorch module (eval-mode dropout)."""
    B, S, H = x.shape
    hd = H // num_heads
    scale = hd ** (-0.5)

    q = x @ params["wq"]
    k = x @ params["wk"]
    v = x @ params["wv"]
    q = q.reshape(B, S, num_heads, hd).transpose(0, 2, 1, 3)
    k = k.reshape(B, S, num_heads, hd).transpose(0, 2, 1, 3)
    v = v.reshape(B, S, num_heads, hd).transpose(0, 2, 1, 3)
    scores = jnp.einsum("bhqd,bhkd->bhqk", q, k) * scale
    scores = jnp.where(mask == 0, -jnp.inf, scores)
    w = jax.nn.softmax(scores, axis=-1)
    attn = jnp.einsum("bhqk,bhkd->bhqd", w, v).transpose(0, 2, 1, 3).reshape(B, S, H)
    attn_out = attn @ params["wo"]

    def ln(z, g, b, eps=1e-5):
        mu = jnp.mean(z, -1, keepdims=True)
        var = jnp.mean((z - mu) ** 2, -1, keepdims=True)
        return (z - mu) / jnp.sqrt(var + eps) * g + b

    x1 = x + ln(attn_out, params["ln1_g"], params["ln1_b"])
    h1 = jnp.maximum(x1 @ params["w1"] + params["b1"], 0.0)
    mlp_out = h1 @ params["w2"] + params["b2"]
    return x1 + ln(mlp_out, params["ln2_g"], params["ln2_b"])


def init_params(key, hidden_dim, mlp_dim):
    ks = jax.random.split(key, 8)

    def kaiming(k, fan_in, shape):
        bound = 1.0 / math.sqrt(fan_in)
        return jax.random.uniform(k, shape, jnp.float32, -bound, bound)

    H, M = hidden_dim, mlp_dim
    return {
        # Linear weights pre-transposed so the kernel computes x @ W
        "wq": kaiming(ks[0], H, (H, H)),
        "wk": kaiming(ks[1], H, (H, H)),
        "wv": kaiming(ks[2], H, (H, H)),
        "wo": kaiming(ks[3], H, (H, H)),
        "w1": kaiming(ks[4], H, (H, M)),
        "b1": kaiming(ks[5], H, (1, M)),
        "w2": kaiming(ks[6], M, (M, H)),
        "b2": kaiming(ks[7], M, (1, H)),
        "ln1_g": jnp.ones((1, H), jnp.float32),
        "ln1_b": jnp.zeros((1, H), jnp.float32),
        "ln2_g": jnp.ones((1, H), jnp.float32),
        "ln2_b": jnp.zeros((1, H), jnp.float32),
    }


if __name__ == "__main__":
    B, S, H, num_heads, mlp_dim = 2, 8, 32, 4, 64

    key = jax.random.PRNGKey(0)
    k_x, k_p = jax.random.split(key)
    x = jax.random.normal(k_x, (B, S, H), jnp.float32)
    # lower-triangular (causal-style) mask to exercise the masking path
    mask = jnp.tril(jnp.ones((S, S), jnp.float32))[None, None].repeat(B, axis=0)
    params = init_params(k_p, H, mlp_dim)

    out = transformer_layer(x, mask, params, num_heads)
    out = jax.block_until_ready(out)

    ref = reference_forward(x, mask, params, num_heads)
    assert out.shape == (B, S, H)
    assert bool(jnp.all(jnp.isfinite(out)))
    # Tolerance relaxed vs the pure-f32 reference because the kernel uses bf16 MXU
    # operands (f32 accumulation) and the EUP approximate reciprocal in softmax.
    assert jnp.allclose(out, ref, atol=1e-1, rtol=2e-2), "mismatch vs reference"

    print("KERNEL_OK")
</pallas_src>

<mosaic_0001>
module attributes {stable_mosaic.version = 11 : i64} {
  func.func @transformer_layer_kernel(%arg0: i32, %arg1: memref<1x8x32xf32, #tpu.memory_space<vmem>>, %arg2: memref<1x1x8x8xbf16, #tpu.memory_space<vmem>>, %arg3: memref<32x32xbf16, #tpu.memory_space<vmem>>, %arg4: memref<32x32xbf16, #tpu.memory_space<vmem>>, %arg5: memref<32x32xbf16, #tpu.memory_space<vmem>>, %arg6: memref<32x32xbf16, #tpu.memory_space<vmem>>, %arg7: memref<1x32xf32, #tpu.memory_space<vmem>>, %arg8: memref<1x32xf32, #tpu.memory_space<vmem>>, %arg9: memref<1x32xf32, #tpu.memory_space<vmem>>, %arg10: memref<1x32xf32, #tpu.memory_space<vmem>>, %arg11: memref<32x64xbf16, #tpu.memory_space<vmem>>, %arg12: memref<1x64xf32, #tpu.memory_space<vmem>>, %arg13: memref<64x32xbf16, #tpu.memory_space<vmem>>, %arg14: memref<1x32xf32, #tpu.memory_space<vmem>>, %arg15: memref<1x8x32xf32, #tpu.memory_space<vmem>>) attributes {dimension_semantics = [#tpu.dimension_semantics<parallel>], iteration_bounds = array<i64: 2>, scalar_prefetch = 0 : i64, scratch_operands = 0 : i64, tpu.core_type = #tpu.core_type<tc>, window_params = [{transform_indices = @transform_0, window_bounds = array<i64: 1, 8, 32>}, {transform_indices = @transform_1, window_bounds = array<i64: 1, 1, 8, 8>}, {pipeline_mode = #tpu.pipeline_mode<synchronous>, transform_indices = @transform_2, window_bounds = array<i64: 32, 32>}, {pipeline_mode = #tpu.pipeline_mode<synchronous>, transform_indices = @transform_3, window_bounds = array<i64: 32, 32>}, {pipeline_mode = #tpu.pipeline_mode<synchronous>, transform_indices = @transform_4, window_bounds = array<i64: 32, 32>}, {pipeline_mode = #tpu.pipeline_mode<synchronous>, transform_indices = @transform_5, window_bounds = array<i64: 32, 32>}, {pipeline_mode = #tpu.pipeline_mode<synchronous>, transform_indices = @transform_6, window_bounds = array<i64: 1, 32>}, {pipeline_mode = #tpu.pipeline_mode<synchronous>, transform_indices = @transform_7, window_bounds = array<i64: 1, 32>}, {pipeline_mode = #tpu.pipeline_mode<synchronous>, transform_indices = @transform_8, window_bounds = array<i64: 1, 32>}, {pipeline_mode = #tpu.pipeline_mode<synchronous>, transform_indices = @transform_9, window_bounds = array<i64: 1, 32>}, {pipeline_mode = #tpu.pipeline_mode<synchronous>, transform_indices = @transform_10, window_bounds = array<i64: 32, 64>}, {pipeline_mode = #tpu.pipeline_mode<synchronous>, transform_indices = @transform_11, window_bounds = array<i64: 1, 64>}, {pipeline_mode = #tpu.pipeline_mode<synchronous>, transform_indices = @transform_12, window_bounds = array<i64: 64, 32>}, {pipeline_mode = #tpu.pipeline_mode<synchronous>, transform_indices = @transform_13, window_bounds = array<i64: 1, 32>}, {transform_indices = @transform_14, window_bounds = array<i64: 1, 8, 32>}]} {
    %c0 = arith.constant 0 : index
    %c0_0 = arith.constant 0 : index
    %c0_1 = arith.constant 0 : index
    %0 = vector.load %arg1[%c0, %c0_0, %c0_1] : memref<1x8x32xf32, #tpu.memory_space<vmem>>, vector<1x8x32xf32>
    %1 = vector.shape_cast %0 : vector<1x8x32xf32> to vector<8x32xf32>
    %2 = arith.truncf %1 : vector<8x32xf32> to vector<8x32xbf16>
    %c0_2 = arith.constant 0 : index
    %c0_3 = arith.constant 0 : index
    %c0_4 = arith.constant 0 : index
    %c0_5 = arith.constant 0 : index
    %3 = vector.load %arg2[%c0_2, %c0_3, %c0_4, %c0_5] : memref<1x1x8x8xbf16, #tpu.memory_space<vmem>>, vector<1x1x8x8xbf16>
    %4 = vector.shape_cast %3 : vector<1x1x8x8xbf16> to vector<8x8xbf16>
    %5 = arith.extf %4 : vector<8x8xbf16> to vector<8x8xf32>
    %c0_6 = arith.constant 0 : index
    %c0_7 = arith.constant 0 : index
    %6 = vector.load %arg3[%c0_6, %c0_7] : memref<32x32xbf16, #tpu.memory_space<vmem>>, vector<32x32xbf16>
    %cst = arith.constant dense<0.000000e+00> : vector<8x32xf32>
    %7 = tpu.matmul %2, %6, %cst {dimension_numbers = #tpu.dot_dimension_numbers<[1], [0], [0], [1], [0, 0, 1, 1], [], []>} : vector<8x32xbf16>, vector<32x32xbf16>, vector<8x32xf32> -> vector<8x32xf32>
    %cst_8 = arith.constant 0.353553385 : f32
    %8 = vector.broadcast %cst_8 : f32 to vector<8x32xf32>
    %9 = arith.mulf %7, %8 : vector<8x32xf32>
    %c0_9 = arith.constant 0 : index
    %c0_10 = arith.constant 0 : index
    %10 = vector.load %arg4[%c0_9, %c0_10] : memref<32x32xbf16, #tpu.memory_space<vmem>>, vector<32x32xbf16>
    %cst_11 = arith.constant dense<0.000000e+00> : vector<8x32xf32>
    %11 = tpu.matmul %2, %10, %cst_11 {dimension_numbers = #tpu.dot_dimension_numbers<[1], [0], [0], [1], [0, 0, 1, 1], [], []>} : vector<8x32xbf16>, vector<32x32xbf16>, vector<8x32xf32> -> vector<8x32xf32>
    %c0_12 = arith.constant 0 : index
    %c0_13 = arith.constant 0 : index
    %12 = vector.load %arg5[%c0_12, %c0_13] : memref<32x32xbf16, #tpu.memory_space<vmem>>, vector<32x32xbf16>
    %cst_14 = arith.constant dense<0.000000e+00> : vector<8x32xf32>
    %13 = tpu.matmul %2, %12, %cst_14 {dimension_numbers = #tpu.dot_dimension_numbers<[1], [0], [0], [1], [0, 0, 1, 1], [], []>} : vector<8x32xbf16>, vector<32x32xbf16>, vector<8x32xf32> -> vector<8x32xf32>
    %14 = arith.truncf %9 : vector<8x32xf32> to vector<8x32xbf16>
    %15 = vector.extract_strided_slice %14 {offsets = [0, 0], sizes = [8, 8], strides = [1, 1]} : vector<8x32xbf16> to vector<8x8xbf16>
    %16 = vector.extract_strided_slice %14 {offsets = [0, 8], sizes = [8, 8], strides = [1, 1]} : vector<8x32xbf16> to vector<8x8xbf16>
    %17 = vector.extract_strided_slice %14 {offsets = [0, 16], sizes = [8, 8], strides = [1, 1]} : vector<8x32xbf16> to vector<8x8xbf16>
    %18 = vector.extract_strided_slice %14 {offsets = [0, 24], sizes = [8, 8], strides = [1, 1]} : vector<8x32xbf16> to vector<8x8xbf16>
    %19 = vector.shape_cast %15 : vector<8x8xbf16> to vector<1x8x8xbf16>
    %20 = vector.shape_cast %16 : vector<8x8xbf16> to vector<1x8x8xbf16>
    %21 = vector.shape_cast %17 : vector<8x8xbf16> to vector<1x8x8xbf16>
    %22 = vector.shape_cast %18 : vector<8x8xbf16> to vector<1x8x8xbf16>
    %23 = tpu.concatenate %19, %20, %21, %22 in 0 : vector<1x8x8xbf16>, vector<1x8x8xbf16>, vector<1x8x8xbf16>, vector<1x8x8xbf16> -> vector<4x8x8xbf16>
    %24 = arith.truncf %11 : vector<8x32xf32> to vector<8x32xbf16>
    %25 = vector.extract_strided_slice %24 {offsets = [0, 0], sizes = [8, 8], strides = [1, 1]} : vector<8x32xbf16> to vector<8x8xbf16>
    %26 = vector.extract_strided_slice %24 {offsets = [0, 8], sizes = [8, 8], strides = [1, 1]} : vector<8x32xbf16> to vector<8x8xbf16>
    %27 = vector.extract_strided_slice %24 {offsets = [0, 16], sizes = [8, 8], strides = [1, 1]} : vector<8x32xbf16> to vector<8x8xbf16>
    %28 = vector.extract_strided_slice %24 {offsets = [0, 24], sizes = [8, 8], strides = [1, 1]} : vector<8x32xbf16> to vector<8x8xbf16>
    %29 = vector.shape_cast %25 : vector<8x8xbf16> to vector<1x8x8xbf16>
    %30 = vector.shape_cast %26 : vector<8x8xbf16> to vector<1x8x8xbf16>
    %31 = vector.shape_cast %27 : vector<8x8xbf16> to vector<1x8x8xbf16>
    %32 = vector.shape_cast %28 : vector<8x8xbf16> to vector<1x8x8xbf16>
    %33 = tpu.concatenate %29, %30, %31, %32 in 0 : vector<1x8x8xbf16>, vector<1x8x8xbf16>, vector<1x8x8xbf16>, vector<1x8x8xbf16> -> vector<4x8x8xbf16>
    %34 = arith.truncf %13 : vector<8x32xf32> to vector<8x32xbf16>
    %35 = vector.extract_strided_slice %34 {offsets = [0, 0], sizes = [8, 8], strides = [1, 1]} : vector<8x32xbf16> to vector<8x8xbf16>
    %36 = vector.extract_strided_slice %34 {offsets = [0, 8], sizes = [8, 8], strides = [1, 1]} : vector<8x32xbf16> to vector<8x8xbf16>
    %37 = vector.extract_strided_slice %34 {offsets = [0, 16], sizes = [8, 8], strides = [1, 1]} : vector<8x32xbf16> to vector<8x8xbf16>
    %38 = vector.extract_strided_slice %34 {offsets = [0, 24], sizes = [8, 8], strides = [1, 1]} : vector<8x32xbf16> to vector<8x8xbf16>
    %39 = vector.shape_cast %35 : vector<8x8xbf16> to vector<1x8x8xbf16>
    %40 = vector.shape_cast %36 : vector<8x8xbf16> to vector<1x8x8xbf16>
    %41 = vector.shape_cast %37 : vector<8x8xbf16> to vector<1x8x8xbf16>
    %42 = vector.shape_cast %38 : vector<8x8xbf16> to vector<1x8x8xbf16>
    %43 = tpu.concatenate %39, %40, %41, %42 in 0 : vector<1x8x8xbf16>, vector<1x8x8xbf16>, vector<1x8x8xbf16>, vector<1x8x8xbf16> -> vector<4x8x8xbf16>
    "tpu.trace_start"() <{level = 10 : i32, message = "hqd,hkd->hqk"}> : () -> ()
    %cst_15 = arith.constant dense<0.000000e+00> : vector<4x8x8xf32>
    %44 = tpu.matmul %23, %33, %cst_15 {dimension_numbers = #tpu.dot_dimension_numbers<[2], [2], [1], [1], [0, 0, 0, 1, 1, 1], [0], [0]>} : vector<4x8x8xbf16>, vector<4x8x8xbf16>, vector<4x8x8xf32> -> vector<4x8x8xf32>
    "tpu.trace_stop"() : () -> ()
    %45 = vector.shape_cast %5 : vector<8x8xf32> to vector<1x8x8xf32>
    %46 = vector.broadcast %45 : vector<1x8x8xf32> to vector<4x8x8xf32>
    %47 = arith.addf %44, %46 : vector<4x8x8xf32>
    %cst_16 = arith.constant dense<0xFF800000> : vector<4x8xf32>
    %48 = vector.multi_reduction <maximumf>, %47, %cst_16 [2] : vector<4x8x8xf32> to vector<4x8xf32>
    %49 = vector.shape_cast %48 : vector<4x8xf32> to vector<4x8x1xf32>
    %50 = vector.broadcast %49 : vector<4x8x1xf32> to vector<4x8x8xf32>
    %51 = arith.subf %47, %50 : vector<4x8x8xf32>
    %52 = math.exp %51 : vector<4x8x8xf32>
    %cst_17 = arith.constant dense<0.000000e+00> : vector<4x8xf32>
    %53 = vector.multi_reduction <add>, %52, %cst_17 [2] : vector<4x8x8xf32> to vector<4x8xf32>
    %54 = vector.shape_cast %53 : vector<4x8xf32> to vector<4x8x1xf32>
    %55 = tpu.reciprocal %54 {approx = true} : vector<4x8x1xf32> -> vector<4x8x1xf32>
    %56 = vector.broadcast %55 : vector<4x8x1xf32> to vector<4x8x8xf32>
    %57 = arith.mulf %52, %56 : vector<4x8x8xf32>
    %58 = arith.truncf %57 : vector<4x8x8xf32> to vector<4x8x8xbf16>
    "tpu.trace_start"() <{level = 10 : i32, message = "hqk,hkd->hqd"}> : () -> ()
    %cst_18 = arith.constant dense<0.000000e+00> : vector<4x8x8xf32>
    %59 = tpu.matmul %58, %43, %cst_18 {dimension_numbers = #tpu.dot_dimension_numbers<[2], [1], [1], [2], [0, 0, 0, 1, 1, 2], [0], [0]>} : vector<4x8x8xbf16>, vector<4x8x8xbf16>, vector<4x8x8xf32> -> vector<4x8x8xf32>
    "tpu.trace_stop"() : () -> ()
    %60 = vector.extract_strided_slice %59 {offsets = [0, 0, 0], sizes = [1, 8, 8], strides = [1, 1, 1]} : vector<4x8x8xf32> to vector<1x8x8xf32>
    %61 = vector.shape_cast %60 : vector<1x8x8xf32> to vector<8x8xf32>
    %62 = vector.extract_strided_slice %59 {offsets = [1, 0, 0], sizes = [1, 8, 8], strides = [1, 1, 1]} : vector<4x8x8xf32> to vector<1x8x8xf32>
    %63 = vector.shape_cast %62 : vector<1x8x8xf32> to vector<8x8xf32>
    %64 = vector.extract_strided_slice %59 {offsets = [2, 0, 0], sizes = [1, 8, 8], strides = [1, 1, 1]} : vector<4x8x8xf32> to vector<1x8x8xf32>
    %65 = vector.shape_cast %64 : vector<1x8x8xf32> to vector<8x8xf32>
    %66 = vector.extract_strided_slice %59 {offsets = [3, 0, 0], sizes = [1, 8, 8], strides = [1, 1, 1]} : vector<4x8x8xf32> to vector<1x8x8xf32>
    %67 = vector.shape_cast %66 : vector<1x8x8xf32> to vector<8x8xf32>
    %68 = tpu.concatenate %61, %63, %65, %67 in 1 : vector<8x8xf32>, vector<8x8xf32>, vector<8x8xf32>, vector<8x8xf32> -> vector<8x32xf32>
    %69 = arith.truncf %68 : vector<8x32xf32> to vector<8x32xbf16>
    %c0_19 = arith.constant 0 : index
    %c0_20 = arith.constant 0 : index
    %70 = vector.load %arg6[%c0_19, %c0_20] : memref<32x32xbf16, #tpu.memory_space<vmem>>, vector<32x32xbf16>
    %cst_21 = arith.constant dense<0.000000e+00> : vector<8x32xf32>
    %71 = tpu.matmul %69, %70, %cst_21 {dimension_numbers = #tpu.dot_dimension_numbers<[1], [0], [0], [1], [0, 0, 1, 1], [], []>} : vector<8x32xbf16>, vector<32x32xbf16>, vector<8x32xf32> -> vector<8x32xf32>
    %c0_22 = arith.constant 0 : index
    %c0_23 = arith.constant 0 : index
    %72 = vector.load %arg7[%c0_22, %c0_23] : memref<1x32xf32, #tpu.memory_space<vmem>>, vector<1x32xf32>
    %c0_24 = arith.constant 0 : index
    %c0_25 = arith.constant 0 : index
    %73 = vector.load %arg8[%c0_24, %c0_25] : memref<1x32xf32, #tpu.memory_space<vmem>>, vector<1x32xf32>
    %cst_26 = arith.constant dense<0.000000e+00> : vector<8xf32>
    %74 = vector.multi_reduction <add>, %71, %cst_26 [1] : vector<8x32xf32> to vector<8xf32>
    %75 = vector.shape_cast %74 : vector<8xf32> to vector<8x1xf32>
    %cst_27 = arith.constant 3.200000e+01 : f32
    %76 = vector.broadcast %cst_27 : f32 to vector<8x1xf32>
    %77 = arith.divf %75, %76 : vector<8x1xf32>
    %78 = vector.broadcast %77 : vector<8x1xf32> to vector<8x32xf32>
    %79 = arith.subf %71, %78 : vector<8x32xf32>
    %80 = arith.mulf %79, %79 : vector<8x32xf32>
    %cst_28 = arith.constant dense<0.000000e+00> : vector<8xf32>
    %81 = vector.multi_reduction <add>, %80, %cst_28 [1] : vector<8x32xf32> to vector<8xf32>
    %82 = vector.shape_cast %81 : vector<8xf32> to vector<8x1xf32>
    %cst_29 = arith.constant 3.200000e+01 : f32
    %83 = vector.broadcast %cst_29 : f32 to vector<8x1xf32>
    %84 = arith.divf %82, %83 : vector<8x1xf32>
    %85 = vector.broadcast %77 : vector<8x1xf32> to vector<8x32xf32>
    %86 = arith.subf %71, %85 : vector<8x32xf32>
    %cst_30 = arith.constant 9.99999974E-6 : f32
    %87 = vector.broadcast %cst_30 : f32 to vector<8x1xf32>
    %88 = arith.addf %84, %87 : vector<8x1xf32>
    %89 = math.rsqrt %88 : vector<8x1xf32>
    %90 = vector.broadcast %89 : vector<8x1xf32> to vector<8x32xf32>
    %91 = arith.mulf %86, %90 : vector<8x32xf32>
    %92 = vector.broadcast %72 : vector<1x32xf32> to vector<8x32xf32>
    %93 = arith.mulf %91, %92 : vector<8x32xf32>
    %94 = vector.broadcast %73 : vector<1x32xf32> to vector<8x32xf32>
    %95 = arith.addf %93, %94 : vector<8x32xf32>
    %96 = arith.addf %1, %95 : vector<8x32xf32>
    %97 = arith.truncf %96 : vector<8x32xf32> to vector<8x32xbf16>
    %c0_31 = arith.constant 0 : index
    %c0_32 = arith.constant 0 : index
    %98 = vector.load %arg11[%c0_31, %c0_32] : memref<32x64xbf16, #tpu.memory_space<vmem>>, vector<32x64xbf16>
    %cst_33 = arith.constant dense<0.000000e+00> : vector<8x64xf32>
    %99 = tpu.matmul %97, %98, %cst_33 {dimension_numbers = #tpu.dot_dimension_numbers<[1], [0], [0], [1], [0, 0, 1, 1], [], []>} : vector<8x32xbf16>, vector<32x64xbf16>, vector<8x64xf32> -> vector<8x64xf32>
    %c0_34 = arith.constant 0 : index
    %c0_35 = arith.constant 0 : index
    %100 = vector.load %arg12[%c0_34, %c0_35] : memref<1x64xf32, #tpu.memory_space<vmem>>, vector<1x64xf32>
    %101 = vector.broadcast %100 : vector<1x64xf32> to vector<8x64xf32>
    %102 = arith.addf %99, %101 : vector<8x64xf32>
    %cst_36 = arith.constant 0.000000e+00 : f32
    %103 = vector.broadcast %cst_36 : f32 to vector<8x64xf32>
    %104 = arith.maximumf %102, %103 : vector<8x64xf32>
    %105 = arith.truncf %104 : vector<8x64xf32> to vector<8x64xbf16>
    %c0_37 = arith.constant 0 : index
    %c0_38 = arith.constant 0 : index
    %106 = vector.load %arg13[%c0_37, %c0_38] : memref<64x32xbf16, #tpu.memory_space<vmem>>, vector<64x32xbf16>
    %cst_39 = arith.constant dense<0.000000e+00> : vector<8x32xf32>
    %107 = tpu.matmul %105, %106, %cst_39 {dimension_numbers = #tpu.dot_dimension_numbers<[1], [0], [0], [1], [0, 0, 1, 1], [], []>} : vector<8x64xbf16>, vector<64x32xbf16>, vector<8x32xf32> -> vector<8x32xf32>
    %c0_40 = arith.constant 0 : index
    %c0_41 = arith.constant 0 : index
    %108 = vector.load %arg14[%c0_40, %c0_41] : memref<1x32xf32, #tpu.memory_space<vmem>>, vector<1x32xf32>
    %109 = vector.broadcast %108 : vector<1x32xf32> to vector<8x32xf32>
    %110 = arith.addf %107, %109 : vector<8x32xf32>
    %c0_42 = arith.constant 0 : index
    %c0_43 = arith.constant 0 : index
    %111 = vector.load %arg9[%c0_42, %c0_43] : memref<1x32xf32, #tpu.memory_space<vmem>>, vector<1x32xf32>
    %c0_44 = arith.constant 0 : index
    %c0_45 = arith.constant 0 : index
    %112 = vector.load %arg10[%c0_44, %c0_45] : memref<1x32xf32, #tpu.memory_space<vmem>>, vector<1x32xf32>
    %cst_46 = arith.constant dense<0.000000e+00> : vector<8xf32>
    %113 = vector.multi_reduction <add>, %110, %cst_46 [1] : vector<8x32xf32> to vector<8xf32>
    %114 = vector.shape_cast %113 : vector<8xf32> to vector<8x1xf32>
    %cst_47 = arith.constant 3.200000e+01 : f32
    %115 = vector.broadcast %cst_47 : f32 to vector<8x1xf32>
    %116 = arith.divf %114, %115 : vector<8x1xf32>
    %117 = vector.broadcast %116 : vector<8x1xf32> to vector<8x32xf32>
    %118 = arith.subf %110, %117 : vector<8x32xf32>
    %119 = arith.mulf %118, %118 : vector<8x32xf32>
    %cst_48 = arith.constant dense<0.000000e+00> : vector<8xf32>
    %120 = vector.multi_reduction <add>, %119, %cst_48 [1] : vector<8x32xf32> to vector<8xf32>
    %121 = vector.shape_cast %120 : vector<8xf32> to vector<8x1xf32>
    %cst_49 = arith.constant 3.200000e+01 : f32
    %122 = vector.broadcast %cst_49 : f32 to vector<8x1xf32>
    %123 = arith.divf %121, %122 : vector<8x1xf32>
    %124 = vector.broadcast %116 : vector<8x1xf32> to vector<8x32xf32>
    %125 = arith.subf %110, %124 : vector<8x32xf32>
    %cst_50 = arith.constant 9.99999974E-6 : f32
    %126 = vector.broadcast %cst_50 : f32 to vector<8x1xf32>
    %127 = arith.addf %123, %126 : vector<8x1xf32>
    %128 = math.rsqrt %127 : vector<8x1xf32>
    %129 = vector.broadcast %128 : vector<8x1xf32> to vector<8x32xf32>
    %130 = arith.mulf %125, %129 : vector<8x32xf32>
    %131 = vector.broadcast %111 : vector<1x32xf32> to vector<8x32xf32>
    %132 = arith.mulf %130, %131 : vector<8x32xf32>
    %133 = vector.broadcast %112 : vector<1x32xf32> to vector<8x32xf32>
    %134 = arith.addf %132, %133 : vector<8x32xf32>
    %135 = arith.addf %96, %134 : vector<8x32xf32>
    %c0_51 = arith.constant 0 : index
    %c0_52 = arith.constant 0 : index
    %c0_53 = arith.constant 0 : index
    %136 = vector.load %arg15[%c0_51, %c0_52, %c0_53] : memref<1x8x32xf32, #tpu.memory_space<vmem>>, vector<1x8x32xf32>
    %137 = vector.shape_cast %136 : vector<1x8x32xf32> to vector<8x32xf32>
    %138 = vector.shape_cast %135 : vector<8x32xf32> to vector<1x8x32xf32>
    tpu.vector_store %arg15[%c0_51, %c0_52, %c0_53], %138 {strides = array<i32>} : memref<1x8x32xf32, #tpu.memory_space<vmem>>, vector<1x8x32xf32>,
    return
  }
  func.func @transform_0(%arg0: i32) -> (i32, i32, i32) {
    %c0_i32 = arith.constant 0 : i32
    %c0_i32_0 = arith.constant 0 : i32
    %c0_i32_1 = arith.constant 0 : i32
    return %arg0, %c0_i32, %c0_i32_0 : i32, i32, i32
  }
  func.func @transform_1(%arg0: i32) -> (i32, i32, i32, i32) {
    %c0_i32 = arith.constant 0 : i32
    %c0_i32_0 = arith.constant 0 : i32
    %c0_i32_1 = arith.constant 0 : i32
    %c0_i32_2 = arith.constant 0 : i32
    return %arg0, %c0_i32, %c0_i32_0, %c0_i32_1 : i32, i32, i32, i32
  }
  func.func @transform_2(%arg0: i32) -> (i32, i32) {
    %c0_i32 = arith.constant 0 : i32
    %c0_i32_0 = arith.constant 0 : i32
    %c0_i32_1 = arith.constant 0 : i32
    return %c0_i32, %c0_i32_0 : i32, i32
  }
  func.func @transform_3(%arg0: i32) -> (i32, i32) {
    %c0_i32 = arith.constant 0 : i32
    %c0_i32_0 = arith.constant 0 : i32
    %c0_i32_1 = arith.constant 0 : i32
    return %c0_i32, %c0_i32_0 : i32, i32
  }
  func.func @transform_4(%arg0: i32) -> (i32, i32) {
    %c0_i32 = arith.constant 0 : i32
    %c0_i32_0 = arith.constant 0 : i32
    %c0_i32_1 = arith.constant 0 : i32
    return %c0_i32, %c0_i32_0 : i32, i32
  }
  func.func @transform_5(%arg0: i32) -> (i32, i32) {
    %c0_i32 = arith.constant 0 : i32
    %c0_i32_0 = arith.constant 0 : i32
    %c0_i32_1 = arith.constant 0 : i32
    return %c0_i32, %c0_i32_0 : i32, i32
  }
  func.func @transform_6(%arg0: i32) -> (i32, i32) {
    %c0_i32 = arith.constant 0 : i32
    %c0_i32_0 = arith.constant 0 : i32
    %c0_i32_1 = arith.constant 0 : i32
    return %c0_i32, %c0_i32_0 : i32, i32
  }
  func.func @transform_7(%arg0: i32) -> (i32, i32) {
    %c0_i32 = arith.constant 0 : i32
    %c0_i32_0 = arith.constant 0 : i32
    %c0_i32_1 = arith.constant 0 : i32
    return %c0_i32, %c0_i32_0 : i32, i32
  }
  func.func @transform_8(%arg0: i32) -> (i32, i32) {
    %c0_i32 = arith.constant 0 : i32
    %c0_i32_0 = arith.constant 0 : i32
    %c0_i32_1 = arith.constant 0 : i32
    return %c0_i32, %c0_i32_0 : i32, i32
  }
  func.func @transform_9(%arg0: i32) -> (i32, i32) {
    %c0_i32 = arith.constant 0 : i32
    %c0_i32_0 = arith.constant 0 : i32
    %c0_i32_1 = arith.constant 0 : i32
    return %c0_i32, %c0_i32_0 : i32, i32
  }
  func.func @transform_10(%arg0: i32) -> (i32, i32) {
    %c0_i32 = arith.constant 0 : i32
    %c0_i32_0 = arith.constant 0 : i32
    %c0_i32_1 = arith.constant 0 : i32
    return %c0_i32, %c0_i32_0 : i32, i32
  }
  func.func @transform_11(%arg0: i32) -> (i32, i32) {
    %c0_i32 = arith.constant 0 : i32
    %c0_i32_0 = arith.constant 0 : i32
    %c0_i32_1 = arith.constant 0 : i32
    return %c0_i32, %c0_i32_0 : i32, i32
  }
  func.func @transform_12(%arg0: i32) -> (i32, i32) {
    %c0_i32 = arith.constant 0 : i32
    %c0_i32_0 = arith.constant 0 : i32
    %c0_i32_1 = arith.constant 0 : i32
    return %c0_i32, %c0_i32_0 : i32, i32
  }
  func.func @transform_13(%arg0: i32) -> (i32, i32) {
    %c0_i32 = arith.constant 0 : i32
    %c0_i32_0 = arith.constant 0 : i32
    %c0_i32_1 = arith.constant 0 : i32
    return %c0_i32, %c0_i32_0 : i32, i32
  }
  func.func @transform_14(%arg0: i32) -> (i32, i32, i32) {
    %c0_i32 = arith.constant 0 : i32
    %c0_i32_0 = arith.constant 0 : i32
    %c0_i32_1 = arith.constant 0 : i32
    return %arg0, %c0_i32, %c0_i32_0 : i32, i32, i32
  }
}

</mosaic_0001>

<llo_original>
// kernel: tpu_custom_call.1
$region0: #{tpu_custom_call.1}
  #allocation0 [shape = 'u32[]', space=smem, size = 0x4, offset = 0x4, fixed_abs, tag = 'smem constant byte address 0x4 - core index']
  #allocation1 [shape = 'u32[72,128]{1,0:T(1,128)}', space=vmem, size = 0x9000, scoped, tag = 'internal scratch']
  %s0 = inlined_call_operand.vmem [shape: f32[2,8,32], index: 0, kind: input, shape index: {}]
  %s1 = inlined_call_operand.hbm [shape: bf16[2,1,8,8], index: 1, kind: input, shape index: {}]
  %s2 = inlined_call_operand.vmem [shape: bf16[32,32], index: 2, kind: input, shape index: {}]
  %s3 = inlined_call_operand.vmem [shape: bf16[32,32], index: 3, kind: input, shape index: {}]
  %s4 = inlined_call_operand.hbm [shape: bf16[32,32], index: 4, kind: input, shape index: {}]
  %s5 = inlined_call_operand.hbm [shape: bf16[32,32], index: 5, kind: input, shape index: {}]
  %s6 = inlined_call_operand.vmem [shape: f32[1,32], index: 6, kind: input, shape index: {}]
  %s7 = inlined_call_operand.vmem [shape: f32[1,32], index: 7, kind: input, shape index: {}]
  %s8 = inlined_call_operand.vmem [shape: f32[1,32], index: 8, kind: input, shape index: {}]
  %s9 = inlined_call_operand.vmem [shape: f32[1,32], index: 9, kind: input, shape index: {}]
  %s10 = inlined_call_operand.hbm [shape: bf16[32,64], index: 10, kind: input, shape index: {}]
  %s11 = inlined_call_operand.vmem [shape: f32[1,64], index: 11, kind: input, shape index: {}]
  %s12 = inlined_call_operand.vmem [shape: bf16[64,32], index: 12, kind: input, shape index: {}]
  %s13 = inlined_call_operand.vmem [shape: f32[1,32], index: 13, kind: input, shape index: {}]
  %s14 = inlined_call_operand.hbm [shape: f32[2,8,32], index: 14, kind: output, shape index: {}]
  %s15 = sld [smem:[#allocation0]]
  $region105: #{tpu_custom_call.1} parent=0
    _
  %s17 = ssub.s32 1, %s15
  %s18 = scalar_select 0, %s17, %s15
  $region1: #{tpu_custom_call.1} parent=0
    #allocation2 [shape = 'u8[4096]{0}', space=vmem, size = 0x1000, scoped, tag = 'input window, operand 1']
    #allocation3 [shape = 's32[2]{0}', space=sflag, size = 0x8, scoped, tag = 'scoped memory for tpu_custom_call.1']
    #allocation4 [shape = 's32[2]{0}', space=sflag, size = 0x8, scoped, tag = 'scoped memory for tpu_custom_call.1']
    #allocation5 [shape = 'u8[8192]{0}', space=vmem, size = 0x2000, scoped, tag = 'input window, operand 4, single buffered']
    #allocation6 [shape = 's32[1]{0}', space=sflag, size = 0x4, scoped, tag = 'scoped memory for tpu_custom_call.1']
    #allocation7 [shape = 'u8[8192]{0}', space=vmem, size = 0x2000, scoped, tag = 'input window, operand 5, single buffered']
    #allocation8 [shape = 'u8[8192]{0}', space=vmem, size = 0x2000, scoped, tag = 'input window, operand 10, single buffered']
    #allocation9 [shape = 's32[1]{0}', space=sflag, size = 0x4, scoped, tag = 'scoped memory for tpu_custom_call.1']
    #allocation10 [shape = 'u8[8192]{0}', space=vmem, size = 0x2000, scoped, tag = 'output window, operand 0']
    %19 = vsyncpa [#allocation3], 0
    %s20 = scalar_lea.sflag [#allocation3], 1
    %21 = vsyncpa %s20, 0
    %22 = vsyncpa [#allocation6], 0
    %23 = vsyncpa [#allocation9], 0
    %24 = vsyncpa [#allocation4], 0
    %s25 = scalar_lea.sflag [#allocation4], 1
    %26 = vsyncpa %s25, 0
    loop: start=0, step=1, limit=4
    $region2: #{tpu_custom_call.1} parent=1 // loop_pre_header
      _
    $region3: #{tpu_custom_call.1} parent=1 // loop_header
      %s28 = sphi 0, %s32
      %p29 = scmp.ge.s32.totalorder %s28, 4
      %s38 = sphi 0, %s40
      %s41 = sphi 0, %s38
      %s42 = sphi 0, %s41
      %s58 = sphi 0, %s42
      %s64 = sphi 0, %s66
      %s67 = sphi 0, %s64
      %s68 = sphi 0, %s67
      %s84 = sphi 0, %s68
      %s88 = sphi 0, %s88
      %s90 = sphi 0, %s88
      %s91 = sphi 0, %s90
      %s105 = sphi 0, %s91
      %s109 = sphi 0, %s109
      %s111 = sphi 0, %s109
      %s112 = sphi 0, %s111
      %s126 = sphi 0, %s112
      %s130 = sphi 0, %s130
      %s132 = sphi 0, %s130
      %s133 = sphi 0, %s132
      %s147 = sphi 0, %s133
      %s151 = sphi 0, %s151
      %s153 = sphi 0, %s151
      %s154 = sphi 0, %s153
      %s168 = sphi 0, %s154
      %s172 = sphi 0, %s172
      %s174 = sphi 0, %s172
      %s175 = sphi 0, %s174
      %s189 = sphi 0, %s175
      %s193 = sphi 0, %s193
      %s195 = sphi 0, %s193
      %s196 = sphi 0, %s195
      %s210 = sphi 0, %s196
      %s214 = sphi 0, %s214
      %s216 = sphi 0, %s214
      %s217 = sphi 0, %s216
      %s231 = sphi 0, %s217
      %s235 = sphi 0, %s235
      %s237 = sphi 0, %s235
      %s238 = sphi 0, %s237
      %s252 = sphi 0, %s238
      %s256 = sphi 0, %s256
      %s258 = sphi 0, %s256
      %s259 = sphi 0, %s258
      %s273 = sphi 0, %s259
      %s277 = sphi 0, %s277
      %s279 = sphi 0, %s277
      %s280 = sphi 0, %s279
      %s294 = sphi 0, %s280
      %s298 = sphi 0, %s298
      %s300 = sphi 0, %s298
      %s301 = sphi 0, %s300
      %s315 = sphi 0, %s301
      %s319 = sphi 0, %s319
      %s321 = sphi 0, %s319
      %s322 = sphi 0, %s321
      %s336 = sphi 0, %s322
      %s342 = sphi 0, %s344
      %s345 = sphi 0, %s342
      %s346 = sphi 0, %s345
      %s362 = sphi 0, %s346
    $region4: #{tpu_custom_call.1} parent=1 // loop_header_branch
      %31 = sbr.rel (%p29) target = $region8
    $region5: #{tpu_custom_call.1} parent=1 // loop_body
      %s33 = ssub.s32 %s28, 1
      %s34 = ssub.s32 %s28, 2
      %s35 = sadd.s32 %s28, 1
      %s36 = ssub.s32 %s28, %s35
      %p37 = scmp.eq.s32.totalorder %s36, 0
      %s39 = sadd.s32 %s38, 1
      %s40 = scalar_select %p37, %s38, %s39
      %p43 = pneg %p37
      %p44 = scmp.eq.s32.totalorder %s28, 1
      %p45 = por %p43, %p44
      %p46 = scmp.ne.s32.totalorder %s38, %s41
      %p47 = scmp.eq.s32.totalorder %s28, 0
      %p48 = por %p46, %p47
      %p49 = scmp.ne.s32.totalorder %s38, %s41
      %p50 = scmp.eq.s32.totalorder %s33, 1
      %p51 = por %p49, %p50
      %p52 = scmp.ne.s32.totalorder %s41, %s42
      %p53 = scmp.eq.s32.totalorder %s33, 0
      %p54 = por %p52, %p53
      %p55 = scmp.ne.s32.totalorder %s41, %s42
      %p56 = scmp.eq.s32.totalorder %s34, 1
      %p57 = por %p55, %p56
      %p59 = scmp.ne.s32.totalorder %s42, %s58
      %p60 = scmp.eq.s32.totalorder %s34, 0
      %p61 = por %p59, %p60
      %s62 = ssub.s32 %s28, %s35
      %p63 = scmp.eq.s32.totalorder %s62, 0
      %s65 = sadd.s32 %s64, 1
      %s66 = scalar_select %p63, %s64, %s65
      %p69 = pneg %p63
      %p70 = scmp.eq.s32.totalorder %s28, 1
      %p71 = por %p69, %p70
      %p72 = scmp.ne.s32.totalorder %s64, %s67
      %p73 = scmp.eq.s32.totalorder %s28, 0
      %p74 = por %p72, %p73
      %p75 = scmp.ne.s32.totalorder %s64, %s67
      %p76 = scmp.eq.s32.totalorder %s33, 1
      %p77 = por %p75, %p76
      %p78 = scmp.ne.s32.totalorder %s67, %s68
      %p79 = scmp.eq.s32.totalorder %s33, 0
      %p80 = por %p78, %p79
      %p81 = scmp.ne.s32.totalorder %s67, %s68
      %p82 = scmp.eq.s32.totalorder %s34, 1
      %p83 = por %p81, %p82
      %p85 = scmp.ne.s32.totalorder %s68, %s84
      %p86 = scmp.eq.s32.totalorder %s34, 0
      %p87 = por %p85, %p86
      %s89 = sadd.s32 %s88, 1
      %p92 = scmp.eq.s32.totalorder %s28, 1
      %p93 = scmp.ne.s32.totalorder %s88, %s90
      %p94 = scmp.eq.s32.totalorder %s28, 0
      %p95 = por %p93, %p94
      %p96 = scmp.ne.s32.totalorder %s88, %s90
      %p97 = scmp.eq.s32.totalorder %s33, 1
      %p98 = por %p96, %p97
      %p99 = scmp.ne.s32.totalorder %s90, %s91
      %p100 = scmp.eq.s32.totalorder %s33, 0
      %p101 = por %p99, %p100
      %p102 = scmp.ne.s32.totalorder %s90, %s91
      %p103 = scmp.eq.s32.totalorder %s34, 1
      %p104 = por %p102, %p103
      %p106 = scmp.ne.s32.totalorder %s91, %s105
      %p107 = scmp.eq.s32.totalorder %s34, 0
      %p108 = por %p106, %p107
      %s110 = sadd.s32 %s109, 1
      %p113 = scmp.eq.s32.totalorder %s28, 1
      %p114 = scmp.ne.s32.totalorder %s109, %s111
      %p115 = scmp.eq.s32.totalorder %s28, 0
      %p116 = por %p114, %p115
      %p117 = scmp.ne.s32.totalorder %s109, %s111
      %p118 = scmp.eq.s32.totalorder %s33, 1
      %p119 = por %p117, %p118
      %p120 = scmp.ne.s32.totalorder %s111, %s112
      %p121 = scmp.eq.s32.totalorder %s33, 0
      %p122 = por %p120, %p121
      %p123 = scmp.ne.s32.totalorder %s111, %s112
      %p124 = scmp.eq.s32.totalorder %s34, 1
      %p125 = por %p123, %p124
      %p127 = scmp.ne.s32.totalorder %s112, %s126
      %p128 = scmp.eq.s32.totalorder %s34, 0
      %p129 = por %p127, %p128
      %s131 = sadd.s32 %s130, 1
      %p134 = scmp.eq.s32.totalorder %s28, 1
      %p135 = scmp.ne.s32.totalorder %s130, %s132
      %p136 = scmp.eq.s32.totalorder %s28, 0
      %p137 = por %p135, %p136
      %p138 = scmp.ne.s32.totalorder %s130, %s132
      %p139 = scmp.eq.s32.totalorder %s33, 1
      %p140 = por %p138, %p139
      %p141 = scmp.ne.s32.totalorder %s132, %s133
      %p142 = scmp.eq.s32.totalorder %s33, 0
      %p143 = por %p141, %p142
      %p144 = scmp.ne.s32.totalorder %s132, %s133
      %p145 = scmp.eq.s32.totalorder %s34, 1
      %p146 = por %p144, %p145
      %p148 = scmp.ne.s32.totalorder %s133, %s147
      %p149 = scmp.eq.s32.totalorder %s34, 0
      %p150 = por %p148, %p149
      %s152 = sadd.s32 %s151, 1
      %p155 = scmp.eq.s32.totalorder %s28, 1
      %p156 = scmp.ne.s32.totalorder %s151, %s153
      %p157 = scmp.eq.s32.totalorder %s28, 0
      %p158 = por %p156, %p157
      %p159 = scmp.ne.s32.totalorder %s151, %s153
      %p160 = scmp.eq.s32.totalorder %s33, 1
      %p161 = por %p159, %p160
      %p162 = scmp.ne.s32.totalorder %s153, %s154
      %p163 = scmp.eq.s32.totalorder %s33, 0
      %p164 = por %p162, %p163
      %p165 = scmp.ne.s32.totalorder %s153, %s154
      %p166 = scmp.eq.s32.totalorder %s34, 1
      %p167 = por %p165, %p166
      %p169 = scmp.ne.s32.totalorder %s154, %s168
      %p170 = scmp.eq.s32.totalorder %s34, 0
      %p171 = por %p169, %p170
      %s173 = sadd.s32 %s172, 1
      %p176 = scmp.eq.s32.totalorder %s28, 1
      %p177 = scmp.ne.s32.totalorder %s172, %s174
      %p178 = scmp.eq.s32.totalorder %s28, 0
      %p179 = por %p177, %p178
      %p180 = scmp.ne.s32.totalorder %s172, %s174
      %p181 = scmp.eq.s32.totalorder %s33, 1
      %p182 = por %p180, %p181
      %p183 = scmp.ne.s32.totalorder %s174, %s175
      %p184 = scmp.eq.s32.totalorder %s33, 0
      %p185 = por %p183, %p184
      %p186 = scmp.ne.s32.totalorder %s174, %s175
      %p187 = scmp.eq.s32.totalorder %s34, 1
      %p188 = por %p186, %p187
      %p190 = scmp.ne.s32.totalorder %s175, %s189
      %p191 = scmp.eq.s32.totalorder %s34, 0
      %p192 = por %p190, %p191
      %s194 = sadd.s32 %s193, 1
      %p197 = scmp.eq.s32.totalorder %s28, 1
      %p198 = scmp.ne.s32.totalorder %s193, %s195
      %p199 = scmp.eq.s32.totalorder %s28, 0
      %p200 = por %p198, %p199
      %p201 = scmp.ne.s32.totalorder %s193, %s195
      %p202 = scmp.eq.s32.totalorder %s33, 1
      %p203 = por %p201, %p202
      %p204 = scmp.ne.s32.totalorder %s195, %s196
      %p205 = scmp.eq.s32.totalorder %s33, 0
      %p206 = por %p204, %p205
      %p207 = scmp.ne.s32.totalorder %s195, %s196
      %p208 = scmp.eq.s32.totalorder %s34, 1
      %p209 = por %p207, %p208
      %p211 = scmp.ne.s32.totalorder %s196, %s210
      %p212 = scmp.eq.s32.totalorder %s34, 0
      %p213 = por %p211, %p212
      %s215 = sadd.s32 %s214, 1
      %p218 = scmp.eq.s32.totalorder %s28, 1
      %p219 = scmp.ne.s32.totalorder %s214, %s216
      %p220 = scmp.eq.s32.totalorder %s28, 0
      %p221 = por %p219, %p220
      %p222 = scmp.ne.s32.totalorder %s214, %s216
      %p223 = scmp.eq.s32.totalorder %s33, 1
      %p224 = por %p222, %p223
      %p225 = scmp.ne.s32.totalorder %s216, %s217
      %p226 = scmp.eq.s32.totalorder %s33, 0
      %p227 = por %p225, %p226
      %p228 = scmp.ne.s32.totalorder %s216, %s217
      %p229 = scmp.eq.s32.totalorder %s34, 1
      %p230 = por %p228, %p229
      %p232 = scmp.ne.s32.totalorder %s217, %s231
      %p233 = scmp.eq.s32.totalorder %s34, 0
      %p234 = por %p232, %p233
      %s236 = sadd.s32 %s235, 1
      %p239 = scmp.eq.s32.totalorder %s28, 1
      %p240 = scmp.ne.s32.totalorder %s235, %s237
      %p241 = scmp.eq.s32.totalorder %s28, 0
      %p242 = por %p240, %p241
      %p243 = scmp.ne.s32.totalorder %s235, %s237
      %p244 = scmp.eq.s32.totalorder %s33, 1
      %p245 = por %p243, %p244
      %p246 = scmp.ne.s32.totalorder %s237, %s238
      %p247 = scmp.eq.s32.totalorder %s33, 0
      %p248 = por %p246, %p247
      %p249 = scmp.ne.s32.totalorder %s237, %s238
      %p250 = scmp.eq.s32.totalorder %s34, 1
      %p251 = por %p249, %p250
      %p253 = scmp.ne.s32.totalorder %s238, %s252
      %p254 = scmp.eq.s32.totalorder %s34, 0
      %p255 = por %p253, %p254
      %s257 = sadd.s32 %s256, 1
      %p260 = scmp.eq.s32.totalorder %s28, 1
      %p261 = scmp.ne.s32.totalorder %s256, %s258
      %p262 = scmp.eq.s32.totalorder %s28, 0
      %p263 = por %p261, %p262
      %p264 = scmp.ne.s32.totalorder %s256, %s258
      %p265 = scmp.eq.s32.totalorder %s33, 1
      %p266 = por %p264, %p265
      %p267 = scmp.ne.s32.totalorder %s258, %s259
      %p268 = scmp.eq.s32.totalorder %s33, 0
      %p269 = por %p267, %p268
      %p270 = scmp.ne.s32.totalorder %s258, %s259
      %p271 = scmp.eq.s32.totalorder %s34, 1
      %p272 = por %p270, %p271
      %p274 = scmp.ne.s32.totalorder %s259, %s273
      %p275 = scmp.eq.s32.totalorder %s34, 0
      %p276 = por %p274, %p275
      %s278 = sadd.s32 %s277, 1
      %p281 = scmp.eq.s32.totalorder %s28, 1
      %p282 = scmp.ne.s32.totalorder %s277, %s279
      %p283 = scmp.eq.s32.totalorder %s28, 0
      %p284 = por %p282, %p283
      %p285 = scmp.ne.s32.totalorder %s277, %s279
      %p286 = scmp.eq.s32.totalorder %s33, 1
      %p287 = por %p285, %p286
      %p288 = scmp.ne.s32.totalorder %s279, %s280
      %p289 = scmp.eq.s32.totalorder %s33, 0
      %p290 = por %p288, %p289
      %p291 = scmp.ne.s32.totalorder %s279, %s280
      %p292 = scmp.eq.s32.totalorder %s34, 1
      %p293 = por %p291, %p292
      %p295 = scmp.ne.s32.totalorder %s280, %s294
      %p296 = scmp.eq.s32.totalorder %s34, 0
      %p297 = por %p295, %p296
      %s299 = sadd.s32 %s298, 1
      %p302 = scmp.eq.s32.totalorder %s28, 1
      %p303 = scmp.ne.s32.totalorder %s298, %s300
      %p304 = scmp.eq.s32.totalorder %s28, 0
      %p305 = por %p303, %p304
      %p306 = scmp.ne.s32.totalorder %s298, %s300
      %p307 = scmp.eq.s32.totalorder %s33, 1
      %p308 = por %p306, %p307
      %p309 = scmp.ne.s32.totalorder %s300, %s301
      %p310 = scmp.eq.s32.totalorder %s33, 0
      %p311 = por %p309, %p310
      %p312 = scmp.ne.s32.totalorder %s300, %s301
      %p313 = scmp.eq.s32.totalorder %s34, 1
      %p314 = por %p312, %p313
      %p316 = scmp.ne.s32.totalorder %s301, %s315
      %p317 = scmp.eq.s32.totalorder %s34, 0
      %p318 = por %p316, %p317
      %s320 = sadd.s32 %s319, 1
      %p323 = scmp.eq.s32.totalorder %s28, 1
      %p324 = scmp.ne.s32.totalorder %s319, %s321
      %p325 = scmp.eq.s32.totalorder %s28, 0
      %p326 = por %p324, %p325
      %p327 = scmp.ne.s32.totalorder %s319, %s321
      %p328 = scmp.eq.s32.totalorder %s33, 1
      %p329 = por %p327, %p328
      %p330 = scmp.ne.s32.totalorder %s321, %s322
      %p331 = scmp.eq.s32.totalorder %s33, 0
      %p332 = por %p330, %p331
      %p333 = scmp.ne.s32.totalorder %s321, %s322
      %p334 = scmp.eq.s32.totalorder %s34, 1
      %p335 = por %p333, %p334
      %p337 = scmp.ne.s32.totalorder %s322, %s336
      %p338 = scmp.eq.s32.totalorder %s34, 0
      %p339 = por %p337, %p338
      %s340 = ssub.s32 %s28, %s35
      %p341 = scmp.eq.s32.totalorder %s340, 0
      %s343 = sadd.s32 %s342, 1
      %s344 = scalar_select %p341, %s342, %s343
      %p347 = pneg %p341
      %p348 = scmp.eq.s32.totalorder %s28, 1
      %p349 = por %p347, %p348
      %p350 = scmp.ne.s32.totalorder %s342, %s345
      %p351 = scmp.eq.s32.totalorder %s28, 0
      %p352 = por %p350, %p351
      %p353 = scmp.ne.s32.totalorder %s342, %s345
      %p354 = scmp.eq.s32.totalorder %s33, 1
      %p355 = por %p353, %p354
      %p356 = scmp.ne.s32.totalorder %s345, %s346
      %p357 = scmp.eq.s32.totalorder %s33, 0
      %p358 = por %p356, %p357
      %p359 = scmp.ne.s32.totalorder %s345, %s346
      %p360 = scmp.eq.s32.totalorder %s34, 1
      %p361 = por %p359, %p360
      %p363 = scmp.ne.s32.totalorder %s346, %s362
      %p364 = scmp.eq.s32.totalorder %s34, 0
      %p365 = por %p363, %p364
      %p366 = scmp.le.s32.totalorder 1, %s28
      %p367 = scmp.lt.s32.totalorder %s28, 3
      %p368 = pnand %p366, %p367
      %p369 = pneg %p368
      // Predicated region
      $region9: #{tpu_custom_call.1} parent=5 // pred_check
        _
      $region10: #{tpu_custom_call.1} parent=5 // pred_check_branch
        %371 = sbr.rel (%p368) target = $region12
      $region11: #{tpu_custom_call.1} parent=5 // pred_region
        %s372 = ssub.s32 %s28, 1
        // Predicated region
        $region13: #{tpu_custom_call.1} parent=11 // pred_check
          %p373 = pneg %p101
        $region14: #{tpu_custom_call.1} parent=11 // pred_check_branch
          %375 = sbr.rel (%p373) target = $region16
        $region15: #{tpu_custom_call.1} parent=11 // pred_region
          _
        $region16: #{tpu_custom_call.1} parent=11 // pred_fallthru
          _
        // Predicated region
        $region17: #{tpu_custom_call.1} parent=11 // pred_check
          %p376 = pneg %p122
        $region18: #{tpu_custom_call.1} parent=11 // pred_check_branch
          %378 = sbr.rel (%p376) target = $region20
        $region19: #{tpu_custom_call.1} parent=11 // pred_region
          _
        $region20: #{tpu_custom_call.1} parent=11 // pred_fallthru
          _
        // Predicated region
        $region21: #{tpu_custom_call.1} parent=11 // pred_check
          %p379 = pneg %p143
        $region22: #{tpu_custom_call.1} parent=11 // pred_check_branch
          %381 = sbr.rel (%p379) target = $region24
        $region23: #{tpu_custom_call.1} parent=11 // pred_region
          %383 = vsyncadd [#allocation6], 0
          %s384 = sshll.u32 %s4, 4
          %s385 = int_to_ptr.hbm [resolvable:$true] %s384
          %s386 = sshll.u32 [#allocation5], 4
          %s387 = int_to_ptr.vmem [resolvable:$true] %s386
          %392 = dma.hbm_to_vmem [thread:$0]  %s385, 256, %s387, [#allocation6], 64, 64, 4
        $region24: #{tpu_custom_call.1} parent=11 // pred_fallthru
          _
        // Predicated region
        $region25: #{tpu_custom_call.1} parent=11 // pred_check
          %p393 = pneg %p164
        $region26: #{tpu_custom_call.1} parent=11 // pred_check_branch
          %395 = sbr.rel (%p393) target = $region28
        $region27: #{tpu_custom_call.1} parent=11 // pred_region
          %397 = vsyncadd [#allocation6], 0
          %s398 = sshll.u32 %s5, 4
          %s399 = int_to_ptr.hbm [resolvable:$true] %s398
          %s400 = sshll.u32 [#allocation7], 4
          %s401 = int_to_ptr.vmem [resolvable:$true] %s400
          %406 = dma.hbm_to_vmem [thread:$0]  %s399, 256, %s401, [#allocation6], 64, 64, 4
        $region28: #{tpu_custom_call.1} parent=11 // pred_fallthru
          _
        // Predicated region
        $region29: #{tpu_custom_call.1} parent=11 // pred_check
          %p407 = pneg %p185
        $region30: #{tpu_custom_call.1} parent=11 // pred_check_branch
          %409 = sbr.rel (%p407) target = $region32
        $region31: #{tpu_custom_call.1} parent=11 // pred_region
          _
        $region32: #{tpu_custom_call.1} parent=11 // pred_fallthru
          _
        // Predicated region
        $region33: #{tpu_custom_call.1} parent=11 // pred_check
          %p410 = pneg %p206
        $region34: #{tpu_custom_call.1} parent=11 // pred_check_branch
          %412 = sbr.rel (%p410) target = $region36
        $region35: #{tpu_custom_call.1} parent=11 // pred_region
          _
        $region36: #{tpu_custom_call.1} parent=11 // pred_fallthru
          _
        // Predicated region
        $region37: #{tpu_custom_call.1} parent=11 // pred_check
          %p413 = pneg %p227
        $region38: #{tpu_custom_call.1} parent=11 // pred_check_branch
          %415 = sbr.rel (%p413) target = $region40
        $region39: #{tpu_custom_call.1} parent=11 // pred_region
          _
        $region40: #{tpu_custom_call.1} parent=11 // pred_fallthru
          _
        // Predicated region
        $region41: #{tpu_custom_call.1} parent=11 // pred_check
          %p416 = pneg %p248
        $region42: #{tpu_custom_call.1} parent=11 // pred_check_branch
          %418 = sbr.rel (%p416) target = $region44
        $region43: #{tpu_custom_call.1} parent=11 // pred_region
          _
        $region44: #{tpu_custom_call.1} parent=11 // pred_fallthru
          _
        // Predicated region
        $region45: #{tpu_custom_call.1} parent=11 // pred_check
          %p419 = pneg %p269
        $region46: #{tpu_custom_call.1} parent=11 // pred_check_branch
          %421 = sbr.rel (%p419) target = $region48
        $region47: #{tpu_custom_call.1} parent=11 // pred_region
          %423 = vsyncadd [#allocation9], 0
          %s424 = sshll.u32 %s10, 4
          %s425 = int_to_ptr.hbm [resolvable:$true] %s424
          %s426 = sshll.u32 [#allocation8], 4
          %s427 = int_to_ptr.vmem [resolvable:$true] %s426
          %432 = dma.hbm_to_vmem [thread:$0]  %s425, 256, %s427, [#allocation9], 64, 64, 4
        $region48: #{tpu_custom_call.1} parent=11 // pred_fallthru
          _
        // Predicated region
        $region49: #{tpu_custom_call.1} parent=11 // pred_check
          %p433 = pneg %p290
        $region50: #{tpu_custom_call.1} parent=11 // pred_check_branch
          %435 = sbr.rel (%p433) target = $region52
        $region51: #{tpu_custom_call.1} parent=11 // pred_region
          _
        $region52: #{tpu_custom_call.1} parent=11 // pred_fallthru
          _
        // Predicated region
        $region53: #{tpu_custom_call.1} parent=11 // pred_check
          %p436 = pneg %p311
        $region54: #{tpu_custom_call.1} parent=11 // pred_check_branch
          %438 = sbr.rel (%p436) target = $region56
        $region55: #{tpu_custom_call.1} parent=11 // pred_region
          _
        $region56: #{tpu_custom_call.1} parent=11 // pred_fallthru
          _
        // Predicated region
        $region57: #{tpu_custom_call.1} parent=11 // pred_check
          %p439 = pneg %p332
        $region58: #{tpu_custom_call.1} parent=11 // pred_check_branch
          %441 = sbr.rel (%p439) target = $region60
        $region59: #{tpu_custom_call.1} parent=11 // pred_region
          _
        $region60: #{tpu_custom_call.1} parent=11 // pred_fallthru
          _
      $region12: #{tpu_custom_call.1} parent=5 // pred_fallthru
        _
      %p442 = scmp.lt.s32.totalorder %s28, 2
      // Predicated region
      $region61: #{tpu_custom_call.1} parent=5 // pred_check
        %p443 = pneg %p442
      $region62: #{tpu_custom_call.1} parent=5 // pred_check_branch
        %445 = sbr.rel (%p443) target = $region64
      $region63: #{tpu_custom_call.1} parent=5 // pred_region
        // Predicated region
        $region65: #{tpu_custom_call.1} parent=63 // pred_check
          %p446 = pneg %p48
        $region66: #{tpu_custom_call.1} parent=63 // pred_check_branch
          %448 = sbr.rel (%p446) target = $region68
        $region67: #{tpu_custom_call.1} parent=63 // pred_region
          %p449 = scmp.lt.s32.totalorder %s28, 1
          %s450 = scalar_select %p449, %s28, 1
          %s451 = smul.addr %s450, 8
          %s452 = scalar_lea.vmem %s0, %s451
        $region68: #{tpu_custom_call.1} parent=63 // pred_fallthru
          _
        // Predicated region
        $region69: #{tpu_custom_call.1} parent=63 // pred_check
          %p453 = pneg %p74
        $region70: #{tpu_custom_call.1} parent=63 // pred_check_branch
          %455 = sbr.rel (%p453) target = $region72
        $region71: #{tpu_custom_call.1} parent=63 // pred_region
          %s456 = sand.u32 %s64, 1
          %s457 = scalar_lea.sflag [#allocation3], %s456
          %s458 = sand.u32 %s64, 1
          %s459 = smul.addr %s458, 4
          %s460 = scalar_lea.vmem [#allocation2], %s459
          %462 = vsyncadd %s457, 0
          %s463 = smul.addr %s28, 4
          %s464 = scalar_lea.hbm %s1, %s463
          %s466 = sshll.u32 %s464, 4
          %s467 = int_to_ptr.hbm [resolvable:$true] %s466
          %s468 = sshll.u32 %s460, 4
          %s469 = int_to_ptr.vmem [resolvable:$true] %s468
          %471 = dma.hbm_to_vmem [thread:$0]  %s467, 64, %s469, %s457
        $region72: #{tpu_custom_call.1} parent=63 // pred_fallthru
          _
      $region64: #{tpu_custom_call.1} parent=5 // pred_fallthru
        _
      %p472 = scmp.le.s32.totalorder 1, %s28
      %p473 = scmp.lt.s32.totalorder %s28, 3
      %p474 = pnand %p472, %p473
      %p475 = pneg %p474
      // Predicated region
      $region73: #{tpu_custom_call.1} parent=5 // pred_check
        _
      $region74: #{tpu_custom_call.1} parent=5 // pred_check_branch
        %477 = sbr.rel (%p474) target = $region76
      $region75: #{tpu_custom_call.1} parent=5 // pred_region
        %s478 = ssub.s32 %s28, 1
        %s479 = sand.u32 %s67, 1
        %s480 = scalar_lea.sflag [#allocation3], %s479
        %s481 = sand.u32 %s67, 1
        %s482 = smul.addr %s481, 4
        %s483 = scalar_lea.vmem [#allocation2], %s482
        // Predicated region
        $region77: #{tpu_custom_call.1} parent=75 // pred_check
          %p484 = pneg %p80
        $region78: #{tpu_custom_call.1} parent=75 // pred_check_branch
          %486 = sbr.rel (%p484) target = $region80
        $region79: #{tpu_custom_call.1} parent=75 // pred_region
          %488 = dma.done %s480, 64
        $region80: #{tpu_custom_call.1} parent=75 // pred_fallthru
          _
        // Predicated region
        $region81: #{tpu_custom_call.1} parent=75 // pred_check
          %p489 = pneg %p143
        $region82: #{tpu_custom_call.1} parent=75 // pred_check_branch
          %491 = sbr.rel (%p489) target = $region84
        $region83: #{tpu_custom_call.1} parent=75 // pred_region
          %493 = dma.done [#allocation6], 256
        $region84: #{tpu_custom_call.1} parent=75 // pred_fallthru
          _
        // Predicated region
        $region85: #{tpu_custom_call.1} parent=75 // pred_check
          %p494 = pneg %p164
        $region86: #{tpu_custom_call.1} parent=75 // pred_check_branch
          %496 = sbr.rel (%p494) target = $region88
        $region87: #{tpu_custom_call.1} parent=75 // pred_region
          %498 = dma.done [#allocation6], 256
        $region88: #{tpu_custom_call.1} parent=75 // pred_fallthru
          _
        // Predicated region
        $region89: #{tpu_custom_call.1} parent=75 // pred_check
          %p499 = pneg %p269
        $region90: #{tpu_custom_call.1} parent=75 // pred_check_branch
          %501 = sbr.rel (%p499) target = $region92
        $region91: #{tpu_custom_call.1} parent=75 // pred_region
          %503 = dma.done [#allocation9], 256
        $region92: #{tpu_custom_call.1} parent=75 // pred_fallthru
          _
        %p504 = scmp.lt.s32.totalorder %s33, 1
        %s505 = scalar_select %p504, %s33, 1
        %s506 = smul.addr %s505, 8
        %s507 = scalar_lea.vmem %s0, %s506
        %p508 = pneg %p54
        %p509 = pneg %p51
        %s510 = sand.u32 %s67, 1
        %s511 = scalar_lea.sflag [#allocation3], %s510
        %s512 = sand.u32 %s67, 1
        %s513 = smul.addr %s512, 4
        %s514 = scalar_lea.vmem [#allocation2], %s513
        %p515 = pneg %p80
        %p516 = pneg %p77
        %p517 = pneg %p101
        %p518 = pneg %p98
        %p519 = pneg %p122
        %p520 = pneg %p119
        %p521 = pneg %p143
        %p522 = pneg %p140
        %p523 = pneg %p164
        %p524 = pneg %p161
        %p525 = pneg %p185
        %p526 = pneg %p182
        %p527 = pneg %p206
        %p528 = pneg %p203
        %p529 = pneg %p227
        %p530 = pneg %p224
        %p531 = pneg %p248
        %p532 = pneg %p245
        %p533 = pneg %p269
        %p534 = pneg %p266
        %p535 = pneg %p290
        %p536 = pneg %p287
        %p537 = pneg %p311
        %p538 = pneg %p308
        %p539 = pneg %p332
        %p540 = pneg %p329
        %p541 = pneg %p358
        %p542 = pneg %p355
        %s543 = sand.u32 %s345, 1
        %s544 = scalar_lea.sflag [#allocation4], %s543
        %s545 = sand.u32 %s345, 1
        %s546 = smul.addr %s545, 8
        %s547 = scalar_lea.vmem [#allocation10], %s546
        %p548 = scmp.lt.s32.totalorder %s33, 1
        %s549 = scalar_select %p548, %s33, 1
        %s550 = smul.addr %s549, 8
        %s551 = scalar_lea.vmem %s0, %s550
        %v553 = vld [vmem:[%s551] sm:$0xff]
        %v554 = vpack.c.bf16 %v553, %v553
        %v555 = vld [vmem:[%s483] sm:$0xf]
        %v556 = vunpack.c.l.bf16 %v555
        %v557 = vld [vmem:[%s2] sm:$0xf]
        %v558 = vld [vmem:[%s2 + $0x4] sm:$0xf]
        %v559 = vld [vmem:[%s2 + $0x8] sm:$0xf]
        %v560 = vld [vmem:[%s2 + $0xc] sm:$0xf]
        %v565 = vunpack.c.l.b16 %v557
        %v566 = vunpack.c.l.b16 %v558
        %v567 = vunpack.c.l.b16 %v559
        %v568 = vunpack.c.l.b16 %v560
        %v569 = vpack.c.b16 %v566, %v565
        %v570 = vpack.c.b16 %v568, %v567
        %vm573 = vcmask 261120
        %v575 = vsel %vm573, %v554, 0
        %577 = vmatpush.bf16.msra.mxu0 0
        %578 = vmatpush.bf16.msra.mxu0 0
        %579 = vmatpush.bf16.msra.mxu0 0
        %580 = vmatpush.bf16.msra.mxu0 0
        %581 = vmatpush.bf16.msra.mxu0 0
        %582 = vmatpush.bf16.msra.mxu0 0
        %583 = vmatpush.bf16.msra.mxu0 %v570
        %584 = vmatpush.bf16.msra.mxu0 %v569
        %585 = vmatmul.bf16.gmra.mxu0 %v575
        %v586 = vpop.f32.mrf.mxu0
        %v587 = vadd.f32 0.0, %v586
        %v588 = vpop.f32.mrf.mxu0
        %589 = vdwg.mxu0
        %v590 = vmul.f32 %v587, 0.35355338
        %v591 = vld [vmem:[%s3] sm:$0xf]
        %v592 = vld [vmem:[%s3 + $0x4] sm:$0xf]
        %v593 = vld [vmem:[%s3 + $0x8] sm:$0xf]
        %v594 = vld [vmem:[%s3 + $0xc] sm:$0xf]
        %v599 = vunpack.c.l.b16 %v591
        %v600 = vunpack.c.l.b16 %v592
        %v601 = vunpack.c.l.b16 %v593
        %v602 = vunpack.c.l.b16 %v594
        %v603 = vpack.c.b16 %v600, %v599
        %v604 = vpack.c.b16 %v602, %v601
        %607 = vmatpush.bf16.msra.mxu0 0
        %608 = vmatpush.bf16.msra.mxu0 0
        %609 = vmatpush.bf16.msra.mxu0 0
        %610 = vmatpush.bf16.msra.mxu0 0
        %611 = vmatpush.bf16.msra.mxu0 0
        %612 = vmatpush.bf16.msra.mxu0 0
        %613 = vmatpush.bf16.msra.mxu0 %v604
        %614 = vmatpush.bf16.msra.mxu0 %v603
        %615 = vmatmul.bf16.gmra.mxu0 %v575
        %v616 = vpop.f32.mrf.mxu0
        %v617 = vadd.f32 0.0, %v616
        %v618 = vpop.f32.mrf.mxu0
        %619 = vdwg.mxu0
        %v620 = vld [vmem:[#allocation5] sm:$0xf]
        %v621 = vld [vmem:[#allocation5 + $0x4] sm:$0xf]
        %v622 = vld [vmem:[#allocation5 + $0x8] sm:$0xf]
        %v623 = vld [vmem:[#allocation5 + $0xc] sm:$0xf]
        %v628 = vunpack.c.l.b16 %v620
        %v629 = vunpack.c.l.b16 %v621
        %v630 = vunpack.c.l.b16 %v622
        %v631 = vunpack.c.l.b16 %v623
        %v632 = vpack.c.b16 %v629, %v628
        %v633 = vpack.c.b16 %v631, %v630
        %636 = vmatpush.bf16.msra.mxu0 0
        %637 = vmatpush.bf16.msra.mxu0 0
        %638 = vmatpush.bf16.msra.mxu0 0
        %639 = vmatpush.bf16.msra.mxu0 0
        %640 = vmatpush.bf16.msra.mxu0 0
        %641 = vmatpush.bf16.msra.mxu0 0
        %642 = vmatpush.bf16.msra.mxu0 %v633
        %643 = vmatpush.bf16.msra.mxu0 %v632
        %644 = vmatmul.bf16.gmra.mxu0 %v575
        %v645 = vpop.f32.mrf.mxu0
        %v646 = vadd.f32 0.0, %v645
        %v647 = vpop.f32.mrf.mxu0
        %648 = vdwg.mxu0
        %v649 = vpack.c.bf16 %v590, %v590
        %651 = vrot.lane.b32.xlu0 %v649, 120
        %v652 = vpop.permute.xlu0 %651
        %653 = vrot.lane.b32.xlu0 %v649, 112
        %v654 = vpop.permute.xlu0 %653
        %655 = vrot.lane.b32.xlu0 %v649, 104
        %v656 = vpop.permute.xlu0 %655
        %v657 = vpack.c.bf16 %v617, %v617
        %659 = vrot.lane.b32.xlu0 %v657, 120
        %v660 = vpop.permute.xlu0 %659
        %661 = vrot.lane.b32.xlu0 %v657, 112
        %v662 = vpop.permute.xlu0 %661
        %663 = vrot.lane.b32.xlu0 %v657, 104
        %v664 = vpop.permute.xlu0 %663
        %v665 = vpack.c.bf16 %v646, %v646
        %667 = vrot.lane.b32.xlu0 %v665, 120
        %v668 = vpop.permute.xlu0 %667
        %669 = vrot.lane.b32.xlu0 %v665, 112
        %v670 = vpop.permute.xlu0 %669
        %671 = vrot.lane.b32.xlu0 %v665, 104
        %v672 = vpop.permute.xlu0 %671
        %vm673 = vcmask 64512
        %v675 = vsel %vm673, %v649, 0
        %v678 = vsel %vm673, %v657, 0
        %680 = vmatpush.bf16.xpose.msra.mxu0 0
        %681 = vmatpush.bf16.xpose.msra.mxu0 0
        %682 = vmatpush.bf16.xpose.msra.mxu0 0
        %683 = vmatpush.bf16.xpose.msra.mxu0 0
        %684 = vmatpush.bf16.xpose.msra.mxu0 0
        %685 = vmatpush.bf16.xpose.msra.mxu0 0
        %686 = vmatpush.bf16.xpose.msra.mxu0 0
        %687 = vmatpush.bf16.xpose.msra.mxu0 %v678
        %688 = vmatmul.bf16.gmra.mxu0 %v675
        %v689 = vpop.f32.mrf.mxu0
        %v690 = vadd.f32 %v556, %v689
        %v691 = vpop.f32.mrf.mxu0
        %692 = vdwg.mxu0
        %v694 = vsel %vm673, %v652, 0
        %v697 = vsel %vm673, %v660, 0
        %699 = vmatpush.bf16.xpose.msra.mxu0 0
        %700 = vmatpush.bf16.xpose.msra.mxu0 0
        %701 = vmatpush.bf16.xpose.msra.mxu0 0
        %702 = vmatpush.bf16.xpose.msra.mxu0 0
        %703 = vmatpush.bf16.xpose.msra.mxu0 0
        %704 = vmatpush.bf16.xpose.msra.mxu0 0
        %705 = vmatpush.bf16.xpose.msra.mxu0 0
        %706 = vmatpush.bf16.xpose.msra.mxu0 %v697
        %707 = vmatmul.bf16.gmra.mxu0 %v694
        %v708 = vpop.f32.mrf.mxu0
        %v709 = vadd.f32 %v556, %v708
        %v710 = vpop.f32.mrf.mxu0
        %711 = vdwg.mxu0
        %v713 = vsel %vm673, %v654, 0
        %v716 = vsel %vm673, %v662, 0
        %718 = vmatpush.bf16.xpose.msra.mxu0 0
        %719 = vmatpush.bf16.xpose.msra.mxu0 0
        %720 = vmatpush.bf16.xpose.msra.mxu0 0
        %721 = vmatpush.bf16.xpose.msra.mxu0 0
        %722 = vmatpush.bf16.xpose.msra.mxu0 0
        %723 = vmatpush.bf16.xpose.msra.mxu0 0
        %724 = vmatpush.bf16.xpose.msra.mxu0 0
        %725 = vmatpush.bf16.xpose.msra.mxu0 %v716
        %726 = vmatmul.bf16.gmra.mxu0 %v713
        %v727 = vpop.f32.mrf.mxu0
        %v728 = vadd.f32 %v556, %v727
        %v729 = vpop.f32.mrf.mxu0
        %730 = vdwg.mxu0
        %v732 = vsel %vm673, %v656, 0
        %v735 = vsel %vm673, %v664, 0
        %737 = vmatpush.bf16.xpose.msra.mxu0 0
        %738 = vmatpush.bf16.xpose.msra.mxu0 0
        %739 = vmatpush.bf16.xpose.msra.mxu0 0
        %740 = vmatpush.bf16.xpose.msra.mxu0 0
        %741 = vmatpush.bf16.xpose.msra.mxu0 0
        %742 = vmatpush.bf16.xpose.msra.mxu0 0
        %743 = vmatpush.bf16.xpose.msra.mxu0 0
        %744 = vmatpush.bf16.xpose.msra.mxu0 %v735
        %745 = vmatmul.bf16.gmra.mxu0 %v732
        %v746 = vpop.f32.mrf.mxu0
        %v747 = vadd.f32 %v556, %v746
        %v748 = vpop.f32.mrf.mxu0
        %749 = vdwg.mxu0
        %v750 = vsel %vm673, %v690, -inf
        %751 = vmax.xlane.f32.xlu0 %v750
        %v752 = vpop.xlane.xlu0 %751
        %v753 = vsel %vm673, %v709, -inf
        %754 = vmax.xlane.f32.xlu0 %v753
        %v755 = vpop.xlane.xlu0 %754
        %v756 = vsel %vm673, %v728, -inf
        %757 = vmax.xlane.f32.xlu0 %v756
        %v758 = vpop.xlane.xlu0 %757
        %v759 = vsel %vm673, %v747, -inf
        %760 = vmax.xlane.f32.xlu0 %v759
        %v761 = vpop.xlane.xlu0 %760
        %v762 = vsub.f32 %v690, %v752
        %v763 = vsub.f32 %v709, %v755
        %v764 = vsub.f32 %v728, %v758
        %v765 = vsub.f32 %v747, %v761
        %v766 = vmul.f32 %v762, 1.442695
        %v767 = vpow.pop %v766
        %v768 = vmul.f32 %v763, 1.442695
        %v769 = vpow.pop %v768
        %v770 = vmul.f32 %v764, 1.442695
        %v771 = vpow.pop %v770
        %v772 = vmul.f32 %v765, 1.442695
        %v773 = vpow.pop %v772
        %v774 = vsel %vm673, %v767, 0.0
        %775 = vadd.xlane.f32.xlu0 %v774
        %v776 = vpop.xlane.xlu0 %775
        %v777 = vsel %vm673, %v769, 0.0
        %778 = vadd.xlane.f32.xlu0 %v777
        %v779 = vpop.xlane.xlu0 %778
        %v780 = vsel %vm673, %v771, 0.0
        %781 = vadd.xlane.f32.xlu0 %v780
        %v782 = vpop.xlane.xlu0 %781
        %v783 = vsel %vm673, %v773, 0.0
        %784 = vadd.xlane.f32.xlu0 %v783
        %v785 = vpop.xlane.xlu0 %784
        %v786 = vrcp.pop %v776
        %v787 = vrcp.pop %v779
        %v788 = vrcp.pop %v782
        %v789 = vrcp.pop %v785
        %v790 = vmul.f32 %v767, %v786
        %v791 = vmul.f32 %v769, %v787
        %v792 = vmul.f32 %v771, %v788
        %v793 = vmul.f32 %v773, %v789
        %v794 = vpack.c.bf16 %v790, %v790
        %v795 = vpack.c.bf16 %v791, %v791
        %v796 = vpack.c.bf16 %v792, %v792
        %v797 = vpack.c.bf16 %v793, %v793
        %v799 = vsel %vm673, %v794, 0
        %vm801 = vcmask 1043456
        %v803 = vsel %vm801, %v665, 0
        %805 = vmatpush.bf16.msra.mxu0 0
        %806 = vmatpush.bf16.msra.mxu0 0
        %807 = vmatpush.bf16.msra.mxu0 0
        %808 = vmatpush.bf16.msra.mxu0 0
        %809 = vmatpush.bf16.msra.mxu0 0
        %810 = vmatpush.bf16.msra.mxu0 0
        %811 = vmatpush.bf16.msra.mxu0 0
        %812 = vmatpush.bf16.msra.mxu0 %v803
        %813 = vmatmul.bf16.gmra.mxu0 %v799
        %v814 = vpop.f32.mrf.mxu0
        %v815 = vadd.f32 0.0, %v814
        %v816 = vpop.f32.mrf.mxu0
        %817 = vdwg.mxu0
        %v819 = vsel %vm673, %v795, 0
        %v822 = vsel %vm801, %v668, 0
        %824 = vmatpush.bf16.msra.mxu0 0
        %825 = vmatpush.bf16.msra.mxu0 0
        %826 = vmatpush.bf16.msra.mxu0 0
        %827 = vmatpush.bf16.msra.mxu0 0
        %828 = vmatpush.bf16.msra.mxu0 0
        %829 = vmatpush.bf16.msra.mxu0 0
        %830 = vmatpush.bf16.msra.mxu0 0
        %831 = vmatpush.bf16.msra.mxu0 %v822
        %832 = vmatmul.bf16.gmra.mxu0 %v819
        %v833 = vpop.f32.mrf.mxu0
        %v834 = vadd.f32 0.0, %v833
        %v835 = vpop.f32.mrf.mxu0
        %836 = vdwg.mxu0
        %v838 = vsel %vm673, %v796, 0
        %v841 = vsel %vm801, %v670, 0
        %843 = vmatpush.bf16.msra.mxu0 0
        %844 = vmatpush.bf16.msra.mxu0 0
        %845 = vmatpush.bf16.msra.mxu0 0
        %846 = vmatpush.bf16.msra.mxu0 0
        %847 = vmatpush.bf16.msra.mxu0 0
        %848 = vmatpush.bf16.msra.mxu0 0
        %849 = vmatpush.bf16.msra.mxu0 0
        %850 = vmatpush.bf16.msra.mxu0 %v841
        %851 = vmatmul.bf16.gmra.mxu0 %v838
        %v852 = vpop.f32.mrf.mxu0
        %v853 = vadd.f32 0.0, %v852
        %v854 = vpop.f32.mrf.mxu0
        %855 = vdwg.mxu0
        %v857 = vsel %vm673, %v797, 0
        %v860 = vsel %vm801, %v672, 0
        %862 = vmatpush.bf16.msra.mxu0 0
        %863 = vmatpush.bf16.msra.mxu0 0
        %864 = vmatpush.bf16.msra.mxu0 0
        %865 = vmatpush.bf16.msra.mxu0 0
        %866 = vmatpush.bf16.msra.mxu0 0
        %867 = vmatpush.bf16.msra.mxu0 0
        %868 = vmatpush.bf16.msra.mxu0 0
        %869 = vmatpush.bf16.msra.mxu0 %v860
        %870 = vmatmul.bf16.gmra.mxu0 %v857
        %v871 = vpop.f32.mrf.mxu0
        %v872 = vadd.f32 0.0, %v871
        %v873 = vpop.f32.mrf.mxu0
        %874 = vdwg.mxu0
        %876 = vrot.lane.b32.xlu0 %v834, 8
        %v877 = vpop.permute.xlu0 %876
        %880 = vrot.lane.b32.xlu0 %v853, 16
        %v881 = vpop.permute.xlu0 %880
        %884 = vrot.lane.b32.xlu0 %v872, 24
        %v885 = vpop.permute.xlu0 %884
        %v887 = vsel %vm673, %v815, %v877
        %vm888 = vcmask 130048
        %v889 = vsel %vm888, %v887, %v881
        %vm890 = vcmask 195584
        %v891 = vsel %vm890, %v889, %v885
        %v892 = vpack.c.bf16 %v891, %v891
        %v893 = vld [vmem:[#allocation7] sm:$0xf]
        %v894 = vld [vmem:[#allocation7 + $0x4] sm:$0xf]
        %v895 = vld [vmem:[#allocation7 + $0x8] sm:$0xf]
        %v896 = vld [vmem:[#allocation7 + $0xc] sm:$0xf]
        %v901 = vunpack.c.l.b16 %v893
        %v902 = vunpack.c.l.b16 %v894
        %v903 = vunpack.c.l.b16 %v895
        %v904 = vunpack.c.l.b16 %v896
        %v905 = vpack.c.b16 %v902, %v901
        %v906 = vpack.c.b16 %v904, %v903
        %v910 = vsel %vm573, %v892, 0
        %912 = vmatpush.bf16.msra.mxu0 0
        %913 = vmatpush.bf16.msra.mxu0 0
        %914 = vmatpush.bf16.msra.mxu0 0
        %915 = vmatpush.bf16.msra.mxu0 0
        %916 = vmatpush.bf16.msra.mxu0 0
        %917 = vmatpush.bf16.msra.mxu0 0
        %918 = vmatpush.bf16.msra.mxu0 %v906
        %919 = vmatpush.bf16.msra.mxu0 %v905
        %920 = vmatmul.bf16.gmra.mxu0 %v910
        %v921 = vpop.f32.mrf.mxu0
        %v922 = vadd.f32 0.0, %v921
        %v923 = vpop.f32.mrf.mxu0
        %924 = vdwg.mxu0
        %v925 = vld [vmem:[%s6] sm:$0x1]
        %v926 = vld [vmem:[%s7] sm:$0x1]
        %v927 = vsel %vm573, %v922, 0.0
        %928 = vadd.xlane.f32.xlu0 %v927
        %v929 = vpop.xlane.xlu0 %928
        %v930 = vrcp.pop 32.0
        %v931 = vmul.f32 32.0, %v930
        %v932 = vsub.f32 1.0, %v931
        %v933 = vmul.f32 %v930, %v932
        %v934 = vadd.f32 %v930, %v933
        %vm935 = vweird.f32 %v930
        %v936 = vsel %vm935, %v930, %v934
        %v937 = vmul.f32 %v929, %v936
        %v938 = vsub.f32 %v922, %v937
        %v939 = vmul.f32 %v938, %v938
        %v940 = vsel %vm573, %v939, 0.0
        %941 = vadd.xlane.f32.xlu0 %v940
        %v942 = vpop.xlane.xlu0 %941
        %v943 = vmul.f32 %v942, %v936
        %v944 = vadd.f32 %v943, 1e-05
        %v945 = vrsqrt.pop %v944
        %v946 = vmul.f32 %v945, %v944
        %v947 = vmul.f32 %v946, %v945
        %v948 = vmul.f32 0.5, %v947
        %v949 = vsub.f32 1.5, %v948
        %v950 = vmul.f32 %v945, %v949
        %vm951 = vweird.f32 %v944
        %vm952 = vweird.f32 %v945
        %vm953 = vmor %vm951, %vm952
        %v954 = vsel %vm953, %v945, %v950
        %v955 = vmul.f32 %v938, %v954
        %v957 = vperm.slane %v925, 0
        %v959 = vmul.f32 %v955, %v957
        %v961 = vperm.slane %v926, 0
        %v963 = vadd.f32 %v959, %v961
        %v964 = vadd.f32 %v553, %v963
        %v965 = vpack.c.bf16 %v964, %v964
        %v966 = vld [vmem:[#allocation8] sm:$0xf]
        %v967 = vld [vmem:[#allocation8 + $0x4] sm:$0xf]
        %v968 = vld [vmem:[#allocation8 + $0x8] sm:$0xf]
        %v969 = vld [vmem:[#allocation8 + $0xc] sm:$0xf]
        %v970 = vld [vmem:[%s11] sm:$0x1]
        %v972 = vperm.slane %v970, 0
        %v978 = vunpack.c.l.b16 %v966
        %v979 = vunpack.c.l.b16 %v967
        %v980 = vunpack.c.l.b16 %v968
        %v981 = vunpack.c.l.b16 %v969
        %v982 = vpack.c.b16 %v979, %v978
        %v983 = vpack.c.b16 %v981, %v980
        %v987 = vsel %vm573, %v965, 0
        %989 = vmatpush.bf16.msra.mxu0 0
        %990 = vmatpush.bf16.msra.mxu0 0
        %991 = vmatpush.bf16.msra.mxu0 0
        %992 = vmatpush.bf16.msra.mxu0 0
        %993 = vmatpush.bf16.msra.mxu0 0
        %994 = vmatpush.bf16.msra.mxu0 0
        %995 = vmatpush.bf16.msra.mxu0 %v983
        %996 = vmatpush.bf16.msra.mxu0 %v982
        %997 = vmatmul.bf16.gmra.mxu0 %v987
        %v998 = vpop.f32.mrf.mxu0
        %v999 = vadd.f32 %v972, %v998
        %v1000 = vpop.f32.mrf.mxu0
        %1001 = vdwg.mxu0
        %v1002 = vmax.f32 %v999, 0.0
        %v1003 = vpack.c.bf16 %v1002, %v1002
        %v1004 = vld [vmem:[%s12] sm:$0xf]
        %v1005 = vld [vmem:[%s12 + $0x4] sm:$0xf]
        %v1006 = vld [vmem:[%s12 + $0x8] sm:$0xf]
        %v1007 = vld [vmem:[%s12 + $0xc] sm:$0xf]
        %v1008 = vld [vmem:[%s12 + $0x10] sm:$0xf]
        %v1009 = vld [vmem:[%s12 + $0x14] sm:$0xf]
        %v1010 = vld [vmem:[%s12 + $0x18] sm:$0xf]
        %v1011 = vld [vmem:[%s12 + $0x1c] sm:$0xf]
        %v1012 = vld [vmem:[%s13] sm:$0x1]
        %v1014 = vperm.slane %v1012, 0
        %v1024 = vunpack.c.l.b16 %v1004
        %v1025 = vunpack.c.l.b16 %v1005
        %v1026 = vunpack.c.l.b16 %v1006
        %v1027 = vunpack.c.l.b16 %v1007
        %v1028 = vunpack.c.l.b16 %v1008
        %v1029 = vunpack.c.l.b16 %v1009
        %v1030 = vunpack.c.l.b16 %v1010
        %v1031 = vunpack.c.l.b16 %v1011
        %v1032 = vpack.c.b16 %v1025, %v1024
        %v1033 = vpack.c.b16 %v1027, %v1026
        %v1034 = vpack.c.b16 %v1029, %v1028
        %v1035 = vpack.c.b16 %v1031, %v1030
        %vm1040 = vcmask 523264
        %v1042 = vsel %vm1040, %v1003, 0
        %1044 = vmatpush.bf16.msra.mxu0 0
        %1045 = vmatpush.bf16.msra.mxu0 0
        %1046 = vmatpush.bf16.msra.mxu0 0
        %1047 = vmatpush.bf16.msra.mxu0 0
        %1048 = vmatpush.bf16.msra.mxu0 %v1035
        %1049 = vmatpush.bf16.msra.mxu0 %v1034
        %1050 = vmatpush.bf16.msra.mxu0 %v1033
        %1051 = vmatpush.bf16.msra.mxu0 %v1032
        %1052 = vmatmul.bf16.gmra.mxu0 %v1042
        %v1053 = vpop.f32.mrf.mxu0
        %v1054 = vadd.f32 %v1014, %v1053
        %v1055 = vpop.f32.mrf.mxu0
        %1056 = vdwg.mxu0
        %v1057 = vld [vmem:[%s8] sm:$0x1]
        %v1058 = vld [vmem:[%s9] sm:$0x1]
        %v1059 = vsel %vm573, %v1054, 0.0
        %1060 = vadd.xlane.f32.xlu0 %v1059
        %v1061 = vpop.xlane.xlu0 %1060
        %v1062 = vmul.f32 %v1061, %v936
        %v1063 = vsub.f32 %v1054, %v1062
        %v1064 = vmul.f32 %v1063, %v1063
        %v1065 = vsel %vm573, %v1064, 0.0
        %1066 = vadd.xlane.f32.xlu0 %v1065
        %v1067 = vpop.xlane.xlu0 %1066
        %v1068 = vmul.f32 %v1067, %v936
        %v1069 = vadd.f32 %v1068, 1e-05
        %v1070 = vrsqrt.pop %v1069
        %v1071 = vmul.f32 %v1070, %v1069
        %v1072 = vmul.f32 %v1071, %v1070
        %v1073 = vmul.f32 0.5, %v1072
        %v1074 = vsub.f32 1.5, %v1073
        %v1075 = vmul.f32 %v1070, %v1074
        %vm1076 = vweird.f32 %v1069
        %vm1077 = vweird.f32 %v1070
        %vm1078 = vmor %vm1076, %vm1077
        %v1079 = vsel %vm1078, %v1070, %v1075
        %v1080 = vmul.f32 %v1063, %v1079
        %v1082 = vperm.slane %v1057, 0
        %v1084 = vmul.f32 %v1080, %v1082
        %v1086 = vperm.slane %v1058, 0
        %v1088 = vadd.f32 %v1084, %v1086
        %v1089 = vadd.f32 %v964, %v1088
        %1090 = vst.msk [vmem:[%s547] sm:$0xff] %vm573, %v1089
        %s1091 = sand.u32 %s345, 1
        %s1092 = scalar_lea.sflag [#allocation4], %s1091
        %s1093 = sand.u32 %s345, 1
        %s1094 = smul.addr %s1093, 8
        %s1095 = scalar_lea.vmem [#allocation10], %s1094
        // Predicated region
        $region93: #{tpu_custom_call.1} parent=75 // pred_check
          %p1096 = pneg %p355
        $region94: #{tpu_custom_call.1} parent=75 // pred_check_branch
          %1098 = sbr.rel (%p1096) target = $region96
        $region95: #{tpu_custom_call.1} parent=75 // pred_region
          %1100 = vsyncadd %s1092, 0
          %s1101 = smul.addr %s33, 8
          %s1102 = scalar_lea.hbm %s14, %s1101
          %s1104 = sshll.u32 %s1095, 4
          %s1105 = int_to_ptr.vmem [resolvable:$true] %s1104
          %s1106 = sshll.u32 %s1102, 4
          %s1107 = int_to_ptr.hbm [resolvable:$true] %s1106
          %1109 = dma.vmem_to_hbm [thread:$0]  %s1105, 128, %s1107, %s1092
        $region96: #{tpu_custom_call.1} parent=75 // pred_fallthru
          _
      $region76: #{tpu_custom_call.1} parent=5 // pred_fallthru
        _
      %p1110 = scmp.le.s32.totalorder 2, %s28
      // Predicated region
      $region97: #{tpu_custom_call.1} parent=5 // pred_check
        %p1111 = pneg %p1110
      $region98: #{tpu_custom_call.1} parent=5 // pred_check_branch
        %1113 = sbr.rel (%p1111) target = $region100
      $region99: #{tpu_custom_call.1} parent=5 // pred_region
        %s1114 = ssub.s32 %s28, 2
        // Predicated region
        $region101: #{tpu_custom_call.1} parent=99 // pred_check
          %p1115 = pneg %p361
        $region102: #{tpu_custom_call.1} parent=99 // pred_check_branch
          %1117 = sbr.rel (%p1115) target = $region104
        $region103: #{tpu_custom_call.1} parent=99 // pred_region
          %s1118 = sand.u32 %s346, 1
          %s1119 = scalar_lea.sflag [#allocation4], %s1118
          %s1120 = sand.u32 %s346, 1
          %s1121 = smul.addr %s1120, 8
          %s1122 = scalar_lea.vmem [#allocation10], %s1121
          %1124 = dma.done %s1119, 128
        $region104: #{tpu_custom_call.1} parent=99 // pred_fallthru
          _
      $region100: #{tpu_custom_call.1} parent=5 // pred_fallthru
        _
    $region6: #{tpu_custom_call.1} parent=1 // loop_footer
      %s32 = sadd.s32 1, %s28
    $region7: #{tpu_custom_call.1} parent=1 // loop_footer_branch
      %27 = sbr.rel target = $region3
    $region8: #{tpu_custom_call.1} parent=1 // loop_exit
      _
    %1125 = vsyncpa [#allocation3], 1
    %s1126 = scalar_lea.sflag [#allocation3], 1
    %1127 = vsyncpa %s1126, 1
    %1128 = vsyncpa [#allocation6], 1
    %1129 = vsyncpa [#allocation9], 1
    %1130 = vsyncpa [#allocation4], 1
    %s1131 = scalar_lea.sflag [#allocation4], 1
    %1132 = vsyncpa %s1131, 1

</llo_original>
